<compile_context>
chip_gen: v7x
topology: tpu7x:2x2x1
jax: 0.10.0
libtpu: 0.0.40
codegen_flags: <defaults>
</compile_context>

<pallas_src>
import functools

import jax
import jax.numpy as jnp
from jax.experimental import pallas as pl
from jax.experimental.pallas import tpu as pltpu

BN_EPS = 1e-5


def _vmem_limit_bytes() -> int:
    """Scoped-VMEM limit per chip generation (v7x: 64 MiB/TC, v5e/v6e: 128 MiB)."""
    phys = 128 << 20
    try:
        info = pltpu.get_tpu_info()
        phys = int(getattr(info, "vmem_capacity_bytes", phys))
    except Exception:
        pass
    if phys <= (64 << 20):                       # v7x: leave ~20 MiB headroom
        return max(16 << 20, min(44 << 20, phys - (20 << 20)))
    return 64 << 20                              # v5e / v6e: 128 MiB physical


def _pick_tile(hw, cin, cout, in_bytes, out_bytes, mxu_bytes, budget_bytes):
    """Largest 128-multiple spatial tile whose per-step working set fits budget.

    Per-step bytes ~= 2-deep double buffer of the three inputs and the output
    plus f32 intermediates (edge/x_p/x_i, y) and the fused-matmul scratch.
    """
    per_lane = (3 * 2 * cin * in_bytes           # p, i, d blocks (x2 buffers)
                + 2 * cout * out_bytes           # output block (x2 buffers)
                + 4 * (5 * cin + cout)           # f32 intermediates
                + 2 * cin * mxu_bytes)           # x_cat scratch (pass 2)
    tm = int(budget_bytes // max(per_lane, 1))
    tm = max(512, min(tm, 32768))
    tm -= tm % 128
    hw_pad = pl.cdiv(hw, 128) * 128
    if hw_pad <= tm:
        return hw_pad                            # one tile per image row
    if hw % 128 == 0:                            # prefer exact divisor: no pad copy
        cand = tm
        while cand >= 128:
            if hw % cand == 0:
                return cand
            cand -= 128
    return tm                                    # cdiv grid; tail is zero padded


# ----------------------------------------------------------------------------
# Pass 1: per-batch Gram statistics of the fused inputs (global BN stats).
#   G = sum_m x x^T (Cin,Cin),  s = sum_m x (Cin,1)  for both branches.
# ----------------------------------------------------------------------------
def _stats_kernel(p_ref, i_ref, d_ref, gp_ref, gi_ref, sp_ref, si_ref, *, mxu_dtype):
    p = p_ref[0].astype(jnp.float32)             # (Cin, tm)
    i = i_ref[0].astype(jnp.float32)
    d = d_ref[0].astype(jnp.float32)

    edge = jax.nn.sigmoid(d)
    x_p = (1.0 - edge) * i + p
    x_i = i + edge * p

    xp = x_p.astype(mxu_dtype)
    xi = x_i.astype(mxu_dtype)
    dn = (((1,), (1,)), ((), ()))                # contract the lane (tm) axis: X @ X^T
    gp = jax.lax.dot_general(xp, xp, dn, preferred_element_type=jnp.float32)
    gi = jax.lax.dot_general(xi, xi, dn, preferred_element_type=jnp.float32)
    sp = jnp.sum(x_p, axis=-1, keepdims=True)    # (Cin, 1)
    si = jnp.sum(x_i, axis=-1, keepdims=True)

    @pl.when(pl.program_id(1) == 0)
    def _():
        gp_ref[...] = jnp.zeros_like(gp_ref)
        gi_ref[...] = jnp.zeros_like(gi_ref)
        sp_ref[...] = jnp.zeros_like(sp_ref)
        si_ref[...] = jnp.zeros_like(si_ref)

    gp_ref[0] += gp
    gi_ref[0] += gi
    sp_ref[0] += sp
    si_ref[0] += si


# ----------------------------------------------------------------------------
# Pass 2: fused conv + BN affine + branch add.  BN scale is pre-folded into the
# weights; the two 1x1 convs become a single matmul with K = 2*Cin.
# ----------------------------------------------------------------------------
def _apply_kernel(p_ref, i_ref, d_ref, w_ref, shift_ref, o_ref, xcat_ref, *, mxu_dtype):
    p = p_ref[0].astype(jnp.float32)             # (Cin, tm)
    i = i_ref[0].astype(jnp.float32)
    d = d_ref[0].astype(jnp.float32)
    cin = p.shape[0]

    edge = jax.nn.sigmoid(d)
    x_p = (1.0 - edge) * i + p
    x_i = i + edge * p

    xcat_ref[:cin, :] = x_p.astype(mxu_dtype)    # [x_p ; x_i]  (2*Cin, tm)
    xcat_ref[cin:, :] = x_i.astype(mxu_dtype)

    y = (jnp.dot(w_ref[...], xcat_ref[...], preferred_element_type=jnp.float32)
         + shift_ref[...])                       # (Cout, tm), lane-dense
    o_ref[0] = y.astype(o_ref.dtype)


def light_bag(p, i, d, w_p, w_i, gamma_p, beta_p, gamma_i, beta_i, *,
              eps=BN_EPS, mxu_dtype=None):
    """p, i, d: NCHW arrays. w_*: (Cout, Cin) (= torch conv weight squeezed).
    gamma_*/beta_*: (Cout,).  Returns NCHW output of Light_Bag.forward."""
    N, Cin, H, W = p.shape
    Cout = w_p.shape[0]
    HW = H * W
    M = N * HW
    f32 = jnp.float32
    if mxu_dtype is None:
        mxu_dtype = jnp.bfloat16 if p.dtype == jnp.bfloat16 else f32

    vmem_limit = _vmem_limit_bytes()
    in_b = jnp.dtype(p.dtype).itemsize
    mxu_b = jnp.dtype(mxu_dtype).itemsize
    tm = _pick_tile(HW, Cin, Cout, in_b, in_b, mxu_b, int(vmem_limit * 0.7))
    n_m = pl.cdiv(HW, tm)
    HWp = n_m * tm

    # NCHW -> (N, C, H*W): a pure reshape, no transpose / extra HBM traffic.
    p3 = p.reshape(N, Cin, HW)
    i3 = i.reshape(N, Cin, HW)
    d3 = d.reshape(N, Cin, HW)
    if HWp != HW:
        # Zero padding is stats-safe: x_p = x_i = 0 on padded lanes (they add
        # nothing to G / s); pass-2 tail lanes are sliced off below.
        pad_cfg = ((0, 0), (0, 0), (0, HWp - HW))
        p3 = jnp.pad(p3, pad_cfg)
        i3 = jnp.pad(i3, pad_cfg)
        d3 = jnp.pad(d3, pad_cfg)

    x_spec = pl.BlockSpec((1, Cin, tm), lambda n, m: (n, 0, m))
    g_spec = pl.BlockSpec((1, Cin, Cin), lambda n, m: (n, 0, 0))
    s_spec = pl.BlockSpec((1, Cin, 1), lambda n, m: (n, 0, 0))

    # ---- pass 1: per-batch Gram statistics (N axis megacore-parallel) ------
    gp_all, gi_all, sp_all, si_all = pl.pallas_call(
        functools.partial(_stats_kernel, mxu_dtype=mxu_dtype),
        out_shape=(jax.ShapeDtypeStruct((N, Cin, Cin), f32),
                   jax.ShapeDtypeStruct((N, Cin, Cin), f32),
                   jax.ShapeDtypeStruct((N, Cin, 1), f32),
                   jax.ShapeDtypeStruct((N, Cin, 1), f32)),
        grid=(N, n_m),
        in_specs=[x_spec, x_spec, x_spec],
        out_specs=(g_spec, g_spec, s_spec, s_spec),
        compiler_params=pltpu.CompilerParams(
            dimension_semantics=("parallel", "arbitrary"),
            vmem_limit_bytes=vmem_limit),
    )(p3, i3, d3)

    # ---- tiny host glue: BN stats from the Gram identity, fold into conv ---
    G_p = jnp.sum(gp_all, axis=0)                    # (Cin, Cin)
    G_i = jnp.sum(gi_all, axis=0)
    s_p = jnp.sum(sp_all, axis=0)[:, 0]              # (Cin,)
    s_i = jnp.sum(si_all, axis=0)[:, 0]

    def _bn_fold(G, s, w, gamma, beta):
        w = w.astype(f32)
        sum_y = w @ s                                # (Cout,)
        sumsq_y = jnp.sum((w @ G) * w, axis=1)       # (Cout,)
        mu = sum_y / M
        # TODO(synk): E[y^2]-E[y]^2 in f32 can cancel for very large M / large
        # activation means; a shifted (pilot-mean) formulation would be safer.
        var = jnp.maximum(sumsq_y / M - mu * mu, 0.0)
        scale = gamma.reshape(-1).astype(f32) * jax.lax.rsqrt(var + eps)
        shift = beta.reshape(-1).astype(f32) - mu * scale
        return scale[:, None] * w, shift[:, None]    # (Cout,Cin), (Cout,1)

    wp_s, shift_p = _bn_fold(G_p, s_p, w_p, gamma_p, beta_p)
    wi_s, shift_i = _bn_fold(G_i, s_i, w_i, gamma_i, beta_i)
    w_cat = jnp.concatenate([wp_s, wi_s], axis=1).astype(mxu_dtype)  # (Cout, 2*Cin)
    shift_sum = (shift_p + shift_i).astype(f32)                      # (Cout, 1)

    # ---- pass 2: fused conv + BN + add (fully parallel -> megacore) --------
    out = pl.pallas_call(
        functools.partial(_apply_kernel, mxu_dtype=mxu_dtype),
        out_shape=jax.ShapeDtypeStruct((N, Cout, HWp), p.dtype),
        grid=(N, n_m),
        in_specs=[x_spec, x_spec, x_spec,
                  pl.BlockSpec((Cout, 2 * Cin), lambda n, m: (0, 0)),
                  pl.BlockSpec((Cout, 1), lambda n, m: (0, 0))],
        out_specs=pl.BlockSpec((1, Cout, tm), lambda n, m: (n, 0, m)),
        scratch_shapes=[pltpu.VMEM((2 * Cin, tm), mxu_dtype)],
        compiler_params=pltpu.CompilerParams(
            dimension_semantics=("parallel", "parallel"),
            vmem_limit_bytes=vmem_limit),
    )(p3, i3, d3, w_cat, shift_sum)

    if HWp != HW:
        out = out[:, :, :HW]
    return out.reshape(N, Cout, H, W)


if __name__ == "__main__":
    key = jax.random.PRNGKey(0)
    N, Cin, Cout, H, W = 2, 4, 8, 16, 16

    k = jax.random.split(key, 9)
    p = jax.random.normal(k[0], (N, Cin, H, W), dtype=jnp.float32)
    i = jax.random.normal(k[1], (N, Cin, H, W), dtype=jnp.float32)
    d = jax.random.normal(k[2], (N, Cin, H, W), dtype=jnp.float32)

    # Conv1x1 weights: torch (Cout, Cin, 1, 1) -> (Cout, Cin).
    w_p = jax.random.normal(k[3], (Cout, Cin), dtype=jnp.float32) / jnp.sqrt(Cin)
    w_i = jax.random.normal(k[4], (Cout, Cin), dtype=jnp.float32) / jnp.sqrt(Cin)

    # BatchNorm affine params (deterministic, non-trivial).
    gamma_p = 1.0 + 0.1 * jax.random.normal(k[5], (Cout,), dtype=jnp.float32)
    beta_p = 0.1 * jax.random.normal(k[6], (Cout,), dtype=jnp.float32)
    gamma_i = 1.0 + 0.1 * jax.random.normal(k[7], (Cout,), dtype=jnp.float32)
    beta_i = 0.1 * jax.random.normal(k[8], (Cout,), dtype=jnp.float32)

    fn = jax.jit(light_bag)
    out = jax.block_until_ready(
        fn(p, i, d, w_p, w_i, gamma_p, beta_p, gamma_i, beta_i))

    # Pure-JAX reference (same math, no Pallas).
    def to_mc(x):
        return jnp.transpose(x, (0, 2, 3, 1)).reshape(N * H * W, Cin)

    ea = jax.nn.sigmoid(to_mc(d))
    xp = (1 - ea) * to_mc(i) + to_mc(p)
    xi = to_mc(i) + ea * to_mc(p)

    def bn(y, g, b):
        mu = jnp.mean(y, axis=0, keepdims=True)
        var = jnp.var(y, axis=0, keepdims=True)
        return (y - mu) / jnp.sqrt(var + BN_EPS) * g + b

    ref = bn(xp @ w_p.T, gamma_p, beta_p) + bn(xi @ w_i.T, gamma_i, beta_i)
    ref = jnp.transpose(ref.reshape(N, H, W, Cout), (0, 3, 1, 2))

    assert out.shape == (N, Cout, H, W)
    assert jnp.allclose(out, ref, atol=1e-4, rtol=1e-4), \
        float(jnp.max(jnp.abs(out - ref)))
    print("KERNEL_OK")
</pallas_src>

<mosaic_0001>
module attributes {stable_mosaic.version = 11 : i64} {
  func.func @_stats_kernel(%arg0: i32, %arg1: i32, %arg2: memref<1x4x256xf32, #tpu.memory_space<vmem>>, %arg3: memref<1x4x256xf32, #tpu.memory_space<vmem>>, %arg4: memref<1x4x256xf32, #tpu.memory_space<vmem>>, %arg5: memref<1x4x4xf32, #tpu.memory_space<vmem>>, %arg6: memref<1x4x4xf32, #tpu.memory_space<vmem>>, %arg7: memref<1x4x1xf32, #tpu.memory_space<vmem>>, %arg8: memref<1x4x1xf32, #tpu.memory_space<vmem>>) attributes {dimension_semantics = [#tpu.dimension_semantics<parallel>, #tpu.dimension_semantics<arbitrary>], iteration_bounds = array<i64: 2, 1>, scalar_prefetch = 0 : i64, scratch_operands = 0 : i64, tpu.core_type = #tpu.core_type<tc>, window_params = [{transform_indices = @transform_0, window_bounds = array<i64: 1, 4, 256>}, {transform_indices = @transform_1, window_bounds = array<i64: 1, 4, 256>}, {transform_indices = @transform_2, window_bounds = array<i64: 1, 4, 256>}, {transform_indices = @transform_3, window_bounds = array<i64: 1, 4, 4>}, {transform_indices = @transform_4, window_bounds = array<i64: 1, 4, 4>}, {transform_indices = @transform_5, window_bounds = array<i64: 1, 4, 1>}, {transform_indices = @transform_6, window_bounds = array<i64: 1, 4, 1>}]} {
    %c0 = arith.constant 0 : index
    %c0_0 = arith.constant 0 : index
    %c0_1 = arith.constant 0 : index
    %0 = vector.load %arg2[%c0, %c0_0, %c0_1] : memref<1x4x256xf32, #tpu.memory_space<vmem>>, vector<1x4x256xf32>
    %1 = vector.shape_cast %0 : vector<1x4x256xf32> to vector<4x256xf32>
    %c0_2 = arith.constant 0 : index
    %c0_3 = arith.constant 0 : index
    %c0_4 = arith.constant 0 : index
    %2 = vector.load %arg3[%c0_2, %c0_3, %c0_4] : memref<1x4x256xf32, #tpu.memory_space<vmem>>, vector<1x4x256xf32>
    %3 = vector.shape_cast %2 : vector<1x4x256xf32> to vector<4x256xf32>
    %c0_5 = arith.constant 0 : index
    %c0_6 = arith.constant 0 : index
    %c0_7 = arith.constant 0 : index
    %4 = vector.load %arg4[%c0_5, %c0_6, %c0_7] : memref<1x4x256xf32, #tpu.memory_space<vmem>>, vector<1x4x256xf32>
    %5 = vector.shape_cast %4 : vector<1x4x256xf32> to vector<4x256xf32>
    %6 = arith.negf %5 : vector<4x256xf32>
    %7 = math.exp %6 : vector<4x256xf32>
    %cst = arith.constant 1.000000e+00 : f32
    %8 = vector.broadcast %cst : f32 to vector<4x256xf32>
    %9 = arith.addf %8, %7 : vector<4x256xf32>
    %10 = arith.divf %8, %9 : vector<4x256xf32>
    %cst_8 = arith.constant 1.000000e+00 : f32
    %11 = vector.broadcast %cst_8 : f32 to vector<4x256xf32>
    %12 = arith.subf %11, %10 : vector<4x256xf32>
    %13 = arith.mulf %12, %3 : vector<4x256xf32>
    %14 = arith.addf %13, %1 : vector<4x256xf32>
    %15 = arith.mulf %10, %1 : vector<4x256xf32>
    %16 = arith.addf %3, %15 : vector<4x256xf32>
    %cst_9 = arith.constant dense<0.000000e+00> : vector<4x4xf32>
    %17 = tpu.matmul %14, %14, %cst_9 {dimension_numbers = #tpu.dot_dimension_numbers<[1], [1], [0], [0], [0, 0, 1, 0], [], []>} : vector<4x256xf32>, vector<4x256xf32>, vector<4x4xf32> -> vector<4x4xf32>
    %cst_10 = arith.constant dense<0.000000e+00> : vector<4x4xf32>
    %18 = tpu.matmul %16, %16, %cst_10 {dimension_numbers = #tpu.dot_dimension_numbers<[1], [1], [0], [0], [0, 0, 1, 0], [], []>} : vector<4x256xf32>, vector<4x256xf32>, vector<4x4xf32> -> vector<4x4xf32>
    %cst_11 = arith.constant dense<0.000000e+00> : vector<4xf32>
    %19 = vector.multi_reduction <add>, %14, %cst_11 [1] : vector<4x256xf32> to vector<4xf32>
    %20 = vector.shape_cast %19 : vector<4xf32> to vector<4x1xf32>
    %cst_12 = arith.constant dense<0.000000e+00> : vector<4xf32>
    %21 = vector.multi_reduction <add>, %16, %cst_12 [1] : vector<4x256xf32> to vector<4xf32>
    %22 = vector.shape_cast %21 : vector<4xf32> to vector<4x1xf32>
    %c0_i32 = arith.constant 0 : i32
    %23 = arith.cmpi eq, %arg1, %c0_i32 : i32
    %24 = arith.extui %23 : i1 to i32
    %c0_i32_13 = arith.constant 0 : i32
    %25 = arith.cmpi ne, %24, %c0_i32_13 : i32
    scf.if %25 {
      %cst_38 = arith.constant 0.000000e+00 : f32
      %50 = vector.broadcast %cst_38 : f32 to vector<1x4x4xf32>
      %c0_39 = arith.constant 0 : index
      %c0_40 = arith.constant 0 : index
      %c0_41 = arith.constant 0 : index
      %51 = vector.load %arg5[%c0_39, %c0_40, %c0_41] : memref<1x4x4xf32, #tpu.memory_space<vmem>>, vector<1x4x4xf32>
      tpu.vector_store %arg5[%c0_39, %c0_40, %c0_41], %50 {strides = array<i32>} : memref<1x4x4xf32, #tpu.memory_space<vmem>>, vector<1x4x4xf32>,
      %cst_42 = arith.constant 0.000000e+00 : f32
      %52 = vector.broadcast %cst_42 : f32 to vector<1x4x4xf32>
      %c0_43 = arith.constant 0 : index
      %c0_44 = arith.constant 0 : index
      %c0_45 = arith.constant 0 : index
      %53 = vector.load %arg6[%c0_43, %c0_44, %c0_45] : memref<1x4x4xf32, #tpu.memory_space<vmem>>, vector<1x4x4xf32>
      tpu.vector_store %arg6[%c0_43, %c0_44, %c0_45], %52 {strides = array<i32>} : memref<1x4x4xf32, #tpu.memory_space<vmem>>, vector<1x4x4xf32>,
      %cst_46 = arith.constant 0.000000e+00 : f32
      %54 = vector.broadcast %cst_46 : f32 to vector<1x4x1xf32>
      %c0_47 = arith.constant 0 : index
      %c0_48 = arith.constant 0 : index
      %c0_49 = arith.constant 0 : index
      %55 = vector.load %arg7[%c0_47, %c0_48, %c0_49] : memref<1x4x1xf32, #tpu.memory_space<vmem>>, vector<1x4x1xf32>
      tpu.vector_store %arg7[%c0_47, %c0_48, %c0_49], %54 {strides = array<i32>} : memref<1x4x1xf32, #tpu.memory_space<vmem>>, vector<1x4x1xf32>,
      %cst_50 = arith.constant 0.000000e+00 : f32
      %56 = vector.broadcast %cst_50 : f32 to vector<1x4x1xf32>
      %c0_51 = arith.constant 0 : index
      %c0_52 = arith.constant 0 : index
      %c0_53 = arith.constant 0 : index
      %57 = vector.load %arg8[%c0_51, %c0_52, %c0_53] : memref<1x4x1xf32, #tpu.memory_space<vmem>>, vector<1x4x1xf32>
      tpu.vector_store %arg8[%c0_51, %c0_52, %c0_53], %56 {strides = array<i32>} : memref<1x4x1xf32, #tpu.memory_space<vmem>>, vector<1x4x1xf32>,
    } else {
    }
    %c0_14 = arith.constant 0 : index
    %c0_15 = arith.constant 0 : index
    %c0_16 = arith.constant 0 : index
    %26 = vector.load %arg5[%c0_14, %c0_15, %c0_16] : memref<1x4x4xf32, #tpu.memory_space<vmem>>, vector<1x4x4xf32>
    %27 = vector.shape_cast %26 : vector<1x4x4xf32> to vector<4x4xf32>
    %28 = arith.addf %27, %17 : vector<4x4xf32>
    %c0_17 = arith.constant 0 : index
    %c0_18 = arith.constant 0 : index
    %c0_19 = arith.constant 0 : index
    %29 = vector.load %arg5[%c0_17, %c0_18, %c0_19] : memref<1x4x4xf32, #tpu.memory_space<vmem>>, vector<1x4x4xf32>
    %30 = vector.shape_cast %29 : vector<1x4x4xf32> to vector<4x4xf32>
    %31 = vector.shape_cast %28 : vector<4x4xf32> to vector<1x4x4xf32>
    tpu.vector_store %arg5[%c0_17, %c0_18, %c0_19], %31 {strides = array<i32>} : memref<1x4x4xf32, #tpu.memory_space<vmem>>, vector<1x4x4xf32>,
    %c0_20 = arith.constant 0 : index
    %c0_21 = arith.constant 0 : index
    %c0_22 = arith.constant 0 : index
    %32 = vector.load %arg6[%c0_20, %c0_21, %c0_22] : memref<1x4x4xf32, #tpu.memory_space<vmem>>, vector<1x4x4xf32>
    %33 = vector.shape_cast %32 : vector<1x4x4xf32> to vector<4x4xf32>
    %34 = arith.addf %33, %18 : vector<4x4xf32>
    %c0_23 = arith.constant 0 : index
    %c0_24 = arith.constant 0 : index
    %c0_25 = arith.constant 0 : index
    %35 = vector.load %arg6[%c0_23, %c0_24, %c0_25] : memref<1x4x4xf32, #tpu.memory_space<vmem>>, vector<1x4x4xf32>
    %36 = vector.shape_cast %35 : vector<1x4x4xf32> to vector<4x4xf32>
    %37 = vector.shape_cast %34 : vector<4x4xf32> to vector<1x4x4xf32>
    tpu.vector_store %arg6[%c0_23, %c0_24, %c0_25], %37 {strides = array<i32>} : memref<1x4x4xf32, #tpu.memory_space<vmem>>, vector<1x4x4xf32>,
    %c0_26 = arith.constant 0 : index
    %c0_27 = arith.constant 0 : index
    %c0_28 = arith.constant 0 : index
    %38 = vector.load %arg7[%c0_26, %c0_27, %c0_28] : memref<1x4x1xf32, #tpu.memory_space<vmem>>, vector<1x4x1xf32>
    %39 = vector.shape_cast %38 : vector<1x4x1xf32> to vector<4x1xf32>
    %40 = arith.addf %39, %20 : vector<4x1xf32>
    %c0_29 = arith.constant 0 : index
    %c0_30 = arith.constant 0 : index
    %c0_31 = arith.constant 0 : index
    %41 = vector.load %arg7[%c0_29, %c0_30, %c0_31] : memref<1x4x1xf32, #tpu.memory_space<vmem>>, vector<1x4x1xf32>
    %42 = vector.shape_cast %41 : vector<1x4x1xf32> to vector<4x1xf32>
    %43 = vector.shape_cast %40 : vector<4x1xf32> to vector<1x4x1xf32>
    tpu.vector_store %arg7[%c0_29, %c0_30, %c0_31], %43 {strides = array<i32>} : memref<1x4x1xf32, #tpu.memory_space<vmem>>, vector<1x4x1xf32>,
    %c0_32 = arith.constant 0 : index
    %c0_33 = arith.constant 0 : index
    %c0_34 = arith.constant 0 : index
    %44 = vector.load %arg8[%c0_32, %c0_33, %c0_34] : memref<1x4x1xf32, #tpu.memory_space<vmem>>, vector<1x4x1xf32>
    %45 = vector.shape_cast %44 : vector<1x4x1xf32> to vector<4x1xf32>
    %46 = arith.addf %45, %22 : vector<4x1xf32>
    %c0_35 = arith.constant 0 : index
    %c0_36 = arith.constant 0 : index
    %c0_37 = arith.constant 0 : index
    %47 = vector.load %arg8[%c0_35, %c0_36, %c0_37] : memref<1x4x1xf32, #tpu.memory_space<vmem>>, vector<1x4x1xf32>
    %48 = vector.shape_cast %47 : vector<1x4x1xf32> to vector<4x1xf32>
    %49 = vector.shape_cast %46 : vector<4x1xf32> to vector<1x4x1xf32>
    tpu.vector_store %arg8[%c0_35, %c0_36, %c0_37], %49 {strides = array<i32>} : memref<1x4x1xf32, #tpu.memory_space<vmem>>, vector<1x4x1xf32>,
    return
  }
  func.func @transform_0(%arg0: i32, %arg1: i32) -> (i32, i32, i32) {
    %c0_i32 = arith.constant 0 : i32
    %c0_i32_0 = arith.constant 0 : i32
    return %arg0, %c0_i32, %arg1 : i32, i32, i32
  }
  func.func @transform_1(%arg0: i32, %arg1: i32) -> (i32, i32, i32) {
    %c0_i32 = arith.constant 0 : i32
    %c0_i32_0 = arith.constant 0 : i32
    return %arg0, %c0_i32, %arg1 : i32, i32, i32
  }
  func.func @transform_2(%arg0: i32, %arg1: i32) -> (i32, i32, i32) {
    %c0_i32 = arith.constant 0 : i32
    %c0_i32_0 = arith.constant 0 : i32
    return %arg0, %c0_i32, %arg1 : i32, i32, i32
  }
  func.func @transform_3(%arg0: i32, %arg1: i32) -> (i32, i32, i32) {
    %c0_i32 = arith.constant 0 : i32
    %c0_i32_0 = arith.constant 0 : i32
    %c0_i32_1 = arith.constant 0 : i32
    return %arg0, %c0_i32, %c0_i32_0 : i32, i32, i32
  }
  func.func @transform_4(%arg0: i32, %arg1: i32) -> (i32, i32, i32) {
    %c0_i32 = arith.constant 0 : i32
    %c0_i32_0 = arith.constant 0 : i32
    %c0_i32_1 = arith.constant 0 : i32
    return %arg0, %c0_i32, %c0_i32_0 : i32, i32, i32
  }
  func.func @transform_5(%arg0: i32, %arg1: i32) -> (i32, i32, i32) {
    %c0_i32 = arith.constant 0 : i32
    %c0_i32_0 = arith.constant 0 : i32
    %c0_i32_1 = arith.constant 0 : i32
    return %arg0, %c0_i32, %c0_i32_0 : i32, i32, i32
  }
  func.func @transform_6(%arg0: i32, %arg1: i32) -> (i32, i32, i32) {
    %c0_i32 = arith.constant 0 : i32
    %c0_i32_0 = arith.constant 0 : i32
    %c0_i32_1 = arith.constant 0 : i32
    return %arg0, %c0_i32, %c0_i32_0 : i32, i32, i32
  }
}

module attributes {stable_mosaic.version = 11 : i64} {
  func.func @_apply_kernel(%arg0: i32, %arg1: i32, %arg2: memref<1x4x256xf32, #tpu.memory_space<vmem>>, %arg3: memref<1x4x256xf32, #tpu.memory_space<vmem>>, %arg4: memref<1x4x256xf32, #tpu.memory_space<vmem>>, %arg5: memref<8x8xf32, #tpu.memory_space<vmem>>, %arg6: memref<8x1xf32, #tpu.memory_space<vmem>>, %arg7: memref<1x8x256xf32, #tpu.memory_space<vmem>>, %arg8: memref<8x256xf32, #tpu.memory_space<vmem>>) attributes {dimension_semantics = [#tpu.dimension_semantics<parallel>, #tpu.dimension_semantics<parallel>], iteration_bounds = array<i64: 2, 1>, scalar_prefetch = 0 : i64, scratch_operands = 1 : i64, tpu.core_type = #tpu.core_type<tc>, window_params = [{transform_indices = @transform_0, window_bounds = array<i64: 1, 4, 256>}, {transform_indices = @transform_1, window_bounds = array<i64: 1, 4, 256>}, {transform_indices = @transform_2, window_bounds = array<i64: 1, 4, 256>}, {pipeline_mode = #tpu.pipeline_mode<synchronous>, transform_indices = @transform_3, window_bounds = array<i64: 8, 8>}, {pipeline_mode = #tpu.pipeline_mode<synchronous>, transform_indices = @transform_4, window_bounds = array<i64: 8, 1>}, {transform_indices = @transform_5, window_bounds = array<i64: 1, 8, 256>}]} {
    %c0 = arith.constant 0 : index
    %c0_0 = arith.constant 0 : index
    %c0_1 = arith.constant 0 : index
    %0 = vector.load %arg2[%c0, %c0_0, %c0_1] : memref<1x4x256xf32, #tpu.memory_space<vmem>>, vector<1x4x256xf32>
    %1 = vector.shape_cast %0 : vector<1x4x256xf32> to vector<4x256xf32>
    %c0_2 = arith.constant 0 : index
    %c0_3 = arith.constant 0 : index
    %c0_4 = arith.constant 0 : index
    %2 = vector.load %arg3[%c0_2, %c0_3, %c0_4] : memref<1x4x256xf32, #tpu.memory_space<vmem>>, vector<1x4x256xf32>
    %3 = vector.shape_cast %2 : vector<1x4x256xf32> to vector<4x256xf32>
    %c0_5 = arith.constant 0 : index
    %c0_6 = arith.constant 0 : index
    %c0_7 = arith.constant 0 : index
    %4 = vector.load %arg4[%c0_5, %c0_6, %c0_7] : memref<1x4x256xf32, #tpu.memory_space<vmem>>, vector<1x4x256xf32>
    %5 = vector.shape_cast %4 : vector<1x4x256xf32> to vector<4x256xf32>
    %6 = arith.negf %5 : vector<4x256xf32>
    %7 = math.exp %6 : vector<4x256xf32>
    %cst = arith.constant 1.000000e+00 : f32
    %8 = vector.broadcast %cst : f32 to vector<4x256xf32>
    %9 = arith.addf %8, %7 : vector<4x256xf32>
    %10 = arith.divf %8, %9 : vector<4x256xf32>
    %cst_8 = arith.constant 1.000000e+00 : f32
    %11 = vector.broadcast %cst_8 : f32 to vector<4x256xf32>
    %12 = arith.subf %11, %10 : vector<4x256xf32>
    %13 = arith.mulf %12, %3 : vector<4x256xf32>
    %14 = arith.addf %13, %1 : vector<4x256xf32>
    %15 = arith.mulf %10, %1 : vector<4x256xf32>
    %16 = arith.addf %3, %15 : vector<4x256xf32>
    %c0_9 = arith.constant 0 : index
    %c0_10 = arith.constant 0 : index
    %17 = vector.load %arg8[%c0_9, %c0_10] : memref<8x256xf32, #tpu.memory_space<vmem>>, vector<4x256xf32>
    tpu.vector_store %arg8[%c0_9, %c0_10], %14 {strides = array<i32>} : memref<8x256xf32, #tpu.memory_space<vmem>>, vector<4x256xf32>,
    %c4 = arith.constant 4 : index
    %c0_11 = arith.constant 0 : index
    %18 = vector.load %arg8[%c4, %c0_11] : memref<8x256xf32, #tpu.memory_space<vmem>>, vector<4x256xf32>
    tpu.vector_store %arg8[%c4, %c0_11], %16 {strides = array<i32>} : memref<8x256xf32, #tpu.memory_space<vmem>>, vector<4x256xf32>,
    %c0_12 = arith.constant 0 : index
    %c0_13 = arith.constant 0 : index
    %19 = vector.load %arg5[%c0_12, %c0_13] : memref<8x8xf32, #tpu.memory_space<vmem>>, vector<8x8xf32>
    %c0_14 = arith.constant 0 : index
    %c0_15 = arith.constant 0 : index
    %20 = vector.load %arg8[%c0_14, %c0_15] : memref<8x256xf32, #tpu.memory_space<vmem>>, vector<8x256xf32>
    %cst_16 = arith.constant dense<0.000000e+00> : vector<8x256xf32>
    %21 = tpu.matmul %19, %20, %cst_16 {dimension_numbers = #tpu.dot_dimension_numbers<[1], [0], [0], [1], [0, 0, 1, 1], [], []>} : vector<8x8xf32>, vector<8x256xf32>, vector<8x256xf32> -> vector<8x256xf32>
    %c0_17 = arith.constant 0 : index
    %c0_18 = arith.constant 0 : index
    %22 = vector.load %arg6[%c0_17, %c0_18] : memref<8x1xf32, #tpu.memory_space<vmem>>, vector<8x1xf32>
    %23 = vector.broadcast %22 : vector<8x1xf32> to vector<8x256xf32>
    %24 = arith.addf %21, %23 : vector<8x256xf32>
    %c0_19 = arith.constant 0 : index
    %c0_20 = arith.constant 0 : index
    %c0_21 = arith.constant 0 : index
    %25 = vector.load %arg7[%c0_19, %c0_20, %c0_21] : memref<1x8x256xf32, #tpu.memory_space<vmem>>, vector<1x8x256xf32>
    %26 = vector.shape_cast %25 : vector<1x8x256xf32> to vector<8x256xf32>
    %27 = vector.shape_cast %24 : vector<8x256xf32> to vector<1x8x256xf32>
    tpu.vector_store %arg7[%c0_19, %c0_20, %c0_21], %27 {strides = array<i32>} : memref<1x8x256xf32, #tpu.memory_space<vmem>>, vector<1x8x256xf32>,
    return
  }
  func.func @transform_0(%arg0: i32, %arg1: i32) -> (i32, i32, i32) {
    %c0_i32 = arith.constant 0 : i32
    %c0_i32_0 = arith.constant 0 : i32
    return %arg0, %c0_i32, %arg1 : i32, i32, i32
  }
  func.func @transform_1(%arg0: i32, %arg1: i32) -> (i32, i32, i32) {
    %c0_i32 = arith.constant 0 : i32
    %c0_i32_0 = arith.constant 0 : i32
    return %arg0, %c0_i32, %arg1 : i32, i32, i32
  }
  func.func @transform_2(%arg0: i32, %arg1: i32) -> (i32, i32, i32) {
    %c0_i32 = arith.constant 0 : i32
    %c0_i32_0 = arith.constant 0 : i32
    return %arg0, %c0_i32, %arg1 : i32, i32, i32
  }
  func.func @transform_3(%arg0: i32, %arg1: i32) -> (i32, i32) {
    %c0_i32 = arith.constant 0 : i32
    %c0_i32_0 = arith.constant 0 : i32
    %c0_i32_1 = arith.constant 0 : i32
    return %c0_i32, %c0_i32_0 : i32, i32
  }
  func.func @transform_4(%arg0: i32, %arg1: i32) -> (i32, i32) {
    %c0_i32 = arith.constant 0 : i32
    %c0_i32_0 = arith.constant 0 : i32
    %c0_i32_1 = arith.constant 0 : i32
    return %c0_i32, %c0_i32_0 : i32, i32
  }
  func.func @transform_5(%arg0: i32, %arg1: i32) -> (i32, i32, i32) {
    %c0_i32 = arith.constant 0 : i32
    %c0_i32_0 = arith.constant 0 : i32
    return %arg0, %c0_i32, %arg1 : i32, i32, i32
  }
}

</mosaic_0001>

<llo_original>
// kernel: light_bag.2
$region0: #{light_bag.2}
  #allocation0 [shape = 'u32[]', space=smem, size = 0x4, offset = 0x4, fixed_abs, tag = 'smem constant byte address 0x4 - core index']
  #allocation1 [shape = 'u32[144,128]{1,0:T(1,128)}', space=vmem, size = 0x12000, scoped, tag = 'internal scratch']
  %s0 = inlined_call_operand.hbm [shape: f32[2,4,256], index: 0, kind: input, shape index: {}]
  %s1 = inlined_call_operand.hbm [shape: f32[2,4,256], index: 1, kind: input, shape index: {}]
  %s2 = inlined_call_operand.hbm [shape: f32[2,4,256], index: 2, kind: input, shape index: {}]
  %s3 = inlined_call_operand.hbm [shape: f32[2,4,4], index: 3, kind: output, shape index: {0}]
  %s4 = inlined_call_operand.hbm [shape: f32[2,4,4], index: 4, kind: output, shape index: {1}]
  %s5 = inlined_call_operand.hbm [shape: f32[2,4,1], index: 5, kind: output, shape index: {2}]
  %s6 = inlined_call_operand.hbm [shape: f32[2,4,1], index: 6, kind: output, shape index: {3}]
  %7 = xla_tuple %s3, %s4, %s5, %s6
  %s8 = sld [smem:[#allocation0]]
  $region85: #{light_bag.2} parent=0
    _
  %s10 = ssub.s32 1, %s8
  %s11 = scalar_select 0, %s10, %s8
  $region1: #{light_bag.2} parent=0
    #allocation2 [shape = 'u8[8192]{0}', space=vmem, size = 0x2000, scoped, tag = 'input window, operand 0']
    #allocation3 [shape = 's32[2]{0}', space=sflag, size = 0x8, scoped, tag = 'scoped memory for light_bag.2']
    #allocation4 [shape = 's32[2]{0}', space=sflag, size = 0x8, scoped, tag = 'scoped memory for light_bag.2']
    #allocation5 [shape = 'u8[8192]{0}', space=vmem, size = 0x2000, scoped, tag = 'input window, operand 1']
    #allocation6 [shape = 's32[2]{0}', space=sflag, size = 0x8, scoped, tag = 'scoped memory for light_bag.2']
    #allocation7 [shape = 'u8[8192]{0}', space=vmem, size = 0x2000, scoped, tag = 'input window, operand 2']
    #allocation8 [shape = 'u8[4096]{0}', space=vmem, size = 0x1000, scoped, tag = 'output window, operand 0']
    #allocation9 [shape = 'u8[4096]{0}', space=vmem, size = 0x1000, scoped, tag = 'output window, operand 1']
    #allocation10 [shape = 's32[2]{0}', space=sflag, size = 0x8, scoped, tag = 'scoped memory for light_bag.2']
    #allocation11 [shape = 'u8[4096]{0}', space=vmem, size = 0x1000, scoped, tag = 'output window, operand 2']
    #allocation12 [shape = 'u8[4096]{0}', space=vmem, size = 0x1000, scoped, tag = 'output window, operand 3']
    #allocation13 [shape = 's32[2]{0}', space=sflag, size = 0x8, scoped, tag = 'scoped memory for light_bag.2']
    %12 = vsyncpa [#allocation3], 0
    %s13 = scalar_lea.sflag [#allocation3], 1
    %14 = vsyncpa %s13, 0
    %15 = vsyncpa [#allocation6], 0
    %s16 = scalar_lea.sflag [#allocation6], 1
    %17 = vsyncpa %s16, 0
    %18 = vsyncpa [#allocation4], 0
    %s19 = scalar_lea.sflag [#allocation4], 1
    %20 = vsyncpa %s19, 0
    %21 = vsyncpa [#allocation10], 0
    %s22 = scalar_lea.sflag [#allocation10], 1
    %23 = vsyncpa %s22, 0
    %24 = vsyncpa [#allocation13], 0
    %s25 = scalar_lea.sflag [#allocation13], 1
    %26 = vsyncpa %s25, 0
    loop: start=0, step=1, limit=4
    $region2: #{light_bag.2} parent=1 // loop_pre_header
      _
    $region3: #{light_bag.2} parent=1 // loop_header
      %s28 = sphi 0, %s32
      %p29 = scmp.ge.s32.totalorder %s28, 4
      %s35 = sphi 0, %s47
      %s36 = sphi 0, %s43
      %s37 = sphi 0, %s35
      %s38 = sphi 0, %s36
      %s39 = sphi 0, %s37
      %s40 = sphi 0, %s38
      %s52 = sphi 0, %s54
      %s55 = sphi 0, %s52
      %s56 = sphi 0, %s55
      %s72 = sphi 0, %s56
      %s80 = sphi 0, %s82
      %s83 = sphi 0, %s80
      %s84 = sphi 0, %s83
      %s100 = sphi 0, %s84
      %s108 = sphi 0, %s110
      %s111 = sphi 0, %s108
      %s112 = sphi 0, %s111
      %s128 = sphi 0, %s112
      %s134 = sphi 0, %s136
      %s137 = sphi 0, %s134
      %s138 = sphi 0, %s137
      %s154 = sphi 0, %s138
      %s160 = sphi 0, %s162
      %s163 = sphi 0, %s160
      %s164 = sphi 0, %s163
      %s180 = sphi 0, %s164
      %s186 = sphi 0, %s188
      %s189 = sphi 0, %s186
      %s190 = sphi 0, %s189
      %s206 = sphi 0, %s190
      %s212 = sphi 0, %s214
      %s215 = sphi 0, %s212
      %s216 = sphi 0, %s215
      %s232 = sphi 0, %s216
    $region4: #{light_bag.2} parent=1 // loop_header_branch
      %31 = sbr.rel (%p29) target = $region8
    $region5: #{light_bag.2} parent=1 // loop_body
      %s33 = ssub.s32 %s28, 1
      %s34 = ssub.s32 %s28, 2
      %s41 = sadd.s32 1, %s36
      %p42 = scmp.ge.s32.totalorder %s41, 1
      %s43 = scalar_select %p42, 0, %s41
      %s44 = sadd.s32 1, %s35
      %s45 = scalar_select %p42, %s44, %s35
      %p46 = scmp.ge.s32.totalorder %s45, 2
      %s47 = scalar_select %p46, 0, %s45
      %s48 = ssub.s32 %s35, %s47
      %s49 = ssub.s32 %s36, %s43
      %s50 = sor.u32 %s48, %s49
      %p51 = scmp.eq.s32.totalorder %s50, 0
      %s53 = sadd.s32 %s52, 1
      %s54 = scalar_select %p51, %s52, %s53
      %p57 = pneg %p51
      %p58 = scmp.eq.s32.totalorder %s28, 1
      %p59 = por %p57, %p58
      %p60 = scmp.ne.s32.totalorder %s52, %s55
      %p61 = scmp.eq.s32.totalorder %s28, 0
      %p62 = por %p60, %p61
      %p63 = scmp.ne.s32.totalorder %s52, %s55
      %p64 = scmp.eq.s32.totalorder %s33, 1
      %p65 = por %p63, %p64
      %p66 = scmp.ne.s32.totalorder %s55, %s56
      %p67 = scmp.eq.s32.totalorder %s33, 0
      %p68 = por %p66, %p67
      %p69 = scmp.ne.s32.totalorder %s55, %s56
      %p70 = scmp.eq.s32.totalorder %s34, 1
      %p71 = por %p69, %p70
      %p73 = scmp.ne.s32.totalorder %s56, %s72
      %p74 = scmp.eq.s32.totalorder %s34, 0
      %p75 = por %p73, %p74
      %s76 = ssub.s32 %s35, %s47
      %s77 = ssub.s32 %s36, %s43
      %s78 = sor.u32 %s76, %s77
      %p79 = scmp.eq.s32.totalorder %s78, 0
      %s81 = sadd.s32 %s80, 1
      %s82 = scalar_select %p79, %s80, %s81
      %p85 = pneg %p79
      %p86 = scmp.eq.s32.totalorder %s28, 1
      %p87 = por %p85, %p86
      %p88 = scmp.ne.s32.totalorder %s80, %s83
      %p89 = scmp.eq.s32.totalorder %s28, 0
      %p90 = por %p88, %p89
      %p91 = scmp.ne.s32.totalorder %s80, %s83
      %p92 = scmp.eq.s32.totalorder %s33, 1
      %p93 = por %p91, %p92
      %p94 = scmp.ne.s32.totalorder %s83, %s84
      %p95 = scmp.eq.s32.totalorder %s33, 0
      %p96 = por %p94, %p95
      %p97 = scmp.ne.s32.totalorder %s83, %s84
      %p98 = scmp.eq.s32.totalorder %s34, 1
      %p99 = por %p97, %p98
      %p101 = scmp.ne.s32.totalorder %s84, %s100
      %p102 = scmp.eq.s32.totalorder %s34, 0
      %p103 = por %p101, %p102
      %s104 = ssub.s32 %s35, %s47
      %s105 = ssub.s32 %s36, %s43
      %s106 = sor.u32 %s104, %s105
      %p107 = scmp.eq.s32.totalorder %s106, 0
      %s109 = sadd.s32 %s108, 1
      %s110 = scalar_select %p107, %s108, %s109
      %p113 = pneg %p107
      %p114 = scmp.eq.s32.totalorder %s28, 1
      %p115 = por %p113, %p114
      %p116 = scmp.ne.s32.totalorder %s108, %s111
      %p117 = scmp.eq.s32.totalorder %s28, 0
      %p118 = por %p116, %p117
      %p119 = scmp.ne.s32.totalorder %s108, %s111
      %p120 = scmp.eq.s32.totalorder %s33, 1
      %p121 = por %p119, %p120
      %p122 = scmp.ne.s32.totalorder %s111, %s112
      %p123 = scmp.eq.s32.totalorder %s33, 0
      %p124 = por %p122, %p123
      %p125 = scmp.ne.s32.totalorder %s111, %s112
      %p126 = scmp.eq.s32.totalorder %s34, 1
      %p127 = por %p125, %p126
      %p129 = scmp.ne.s32.totalorder %s112, %s128
      %p130 = scmp.eq.s32.totalorder %s34, 0
      %p131 = por %p129, %p130
      %s132 = ssub.s32 %s35, %s47
      %p133 = scmp.eq.s32.totalorder %s132, 0
      %s135 = sadd.s32 %s134, 1
      %s136 = scalar_select %p133, %s134, %s135
      %p139 = pneg %p133
      %p140 = scmp.eq.s32.totalorder %s28, 1
      %p141 = por %p139, %p140
      %p142 = scmp.ne.s32.totalorder %s134, %s137
      %p143 = scmp.eq.s32.totalorder %s28, 0
      %p144 = por %p142, %p143
      %p145 = scmp.ne.s32.totalorder %s134, %s137
      %p146 = scmp.eq.s32.totalorder %s33, 1
      %p147 = por %p145, %p146
      %p148 = scmp.ne.s32.totalorder %s137, %s138
      %p149 = scmp.eq.s32.totalorder %s33, 0
      %p150 = por %p148, %p149
      %p151 = scmp.ne.s32.totalorder %s137, %s138
      %p152 = scmp.eq.s32.totalorder %s34, 1
      %p153 = por %p151, %p152
      %p155 = scmp.ne.s32.totalorder %s138, %s154
      %p156 = scmp.eq.s32.totalorder %s34, 0
      %p157 = por %p155, %p156
      %s158 = ssub.s32 %s35, %s47
      %p159 = scmp.eq.s32.totalorder %s158, 0
      %s161 = sadd.s32 %s160, 1
      %s162 = scalar_select %p159, %s160, %s161
      %p165 = pneg %p159
      %p166 = scmp.eq.s32.totalorder %s28, 1
      %p167 = por %p165, %p166
      %p168 = scmp.ne.s32.totalorder %s160, %s163
      %p169 = scmp.eq.s32.totalorder %s28, 0
      %p170 = por %p168, %p169
      %p171 = scmp.ne.s32.totalorder %s160, %s163
      %p172 = scmp.eq.s32.totalorder %s33, 1
      %p173 = por %p171, %p172
      %p174 = scmp.ne.s32.totalorder %s163, %s164
      %p175 = scmp.eq.s32.totalorder %s33, 0
      %p176 = por %p174, %p175
      %p177 = scmp.ne.s32.totalorder %s163, %s164
      %p178 = scmp.eq.s32.totalorder %s34, 1
      %p179 = por %p177, %p178
      %p181 = scmp.ne.s32.totalorder %s164, %s180
      %p182 = scmp.eq.s32.totalorder %s34, 0
      %p183 = por %p181, %p182
      %s184 = ssub.s32 %s35, %s47
      %p185 = scmp.eq.s32.totalorder %s184, 0
      %s187 = sadd.s32 %s186, 1
      %s188 = scalar_select %p185, %s186, %s187
      %p191 = pneg %p185
      %p192 = scmp.eq.s32.totalorder %s28, 1
      %p193 = por %p191, %p192
      %p194 = scmp.ne.s32.totalorder %s186, %s189
      %p195 = scmp.eq.s32.totalorder %s28, 0
      %p196 = por %p194, %p195
      %p197 = scmp.ne.s32.totalorder %s186, %s189
      %p198 = scmp.eq.s32.totalorder %s33, 1
      %p199 = por %p197, %p198
      %p200 = scmp.ne.s32.totalorder %s189, %s190
      %p201 = scmp.eq.s32.totalorder %s33, 0
      %p202 = por %p200, %p201
      %p203 = scmp.ne.s32.totalorder %s189, %s190
      %p204 = scmp.eq.s32.totalorder %s34, 1
      %p205 = por %p203, %p204
      %p207 = scmp.ne.s32.totalorder %s190, %s206
      %p208 = scmp.eq.s32.totalorder %s34, 0
      %p209 = por %p207, %p208
      %s210 = ssub.s32 %s35, %s47
      %p211 = scmp.eq.s32.totalorder %s210, 0
      %s213 = sadd.s32 %s212, 1
      %s214 = scalar_select %p211, %s212, %s213
      %p217 = pneg %p211
      %p218 = scmp.eq.s32.totalorder %s28, 1
      %p219 = por %p217, %p218
      %p220 = scmp.ne.s32.totalorder %s212, %s215
      %p221 = scmp.eq.s32.totalorder %s28, 0
      %p222 = por %p220, %p221
      %p223 = scmp.ne.s32.totalorder %s212, %s215
      %p224 = scmp.eq.s32.totalorder %s33, 1
      %p225 = por %p223, %p224
      %p226 = scmp.ne.s32.totalorder %s215, %s216
      %p227 = scmp.eq.s32.totalorder %s33, 0
      %p228 = por %p226, %p227
      %p229 = scmp.ne.s32.totalorder %s215, %s216
      %p230 = scmp.eq.s32.totalorder %s34, 1
      %p231 = por %p229, %p230
      %p233 = scmp.ne.s32.totalorder %s216, %s232
      %p234 = scmp.eq.s32.totalorder %s34, 0
      %p235 = por %p233, %p234
      %p236 = scmp.le.s32.totalorder 1, %s28
      %p237 = scmp.lt.s32.totalorder %s28, 3
      %p238 = pnand %p236, %p237
      %p239 = pneg %p238
      // Predicated region
      $region9: #{light_bag.2} parent=5 // pred_check
        _
      $region10: #{light_bag.2} parent=5 // pred_check_branch
        %241 = sbr.rel (%p238) target = $region12
      $region11: #{light_bag.2} parent=5 // pred_region
        %s242 = ssub.s32 %s28, 1
      $region12: #{light_bag.2} parent=5 // pred_fallthru
        _
      %p243 = scmp.lt.s32.totalorder %s28, 2
      // Predicated region
      $region13: #{light_bag.2} parent=5 // pred_check
        %p244 = pneg %p243
      $region14: #{light_bag.2} parent=5 // pred_check_branch
        %246 = sbr.rel (%p244) target = $region16
      $region15: #{light_bag.2} parent=5 // pred_region
        // Predicated region
        $region17: #{light_bag.2} parent=15 // pred_check
          %p247 = pneg %p62
        $region18: #{light_bag.2} parent=15 // pred_check_branch
          %249 = sbr.rel (%p247) target = $region20
        $region19: #{light_bag.2} parent=15 // pred_region
          %s250 = sand.u32 %s52, 1
          %s251 = scalar_lea.sflag [#allocation3], %s250
          %s252 = sand.u32 %s52, 1
          %s253 = smul.addr %s252, 8
          %s254 = scalar_lea.vmem [#allocation2], %s253
          %s255 = smul.u32 2, %s36
          %s257 = ssub.s32 128, 128
          %258 = vsyncadd %s251, %s257
          %s259 = smul.addr %s35, 2
          %s260 = sadd.s32 %s255, %s259
          %s261 = smul.addr %s260, 64
          %s262 = scalar_lea.hbm %s0, %s261
          %s264 = sshll.u32 %s254, 4
          %s265 = int_to_ptr.vmem [resolvable:$true] %s264
          %267 = dma.hbm_to_vmem [thread:$0]  %s262, 128, %s265, %s251
        $region20: #{light_bag.2} parent=15 // pred_fallthru
          _
        // Predicated region
        $region21: #{light_bag.2} parent=15 // pred_check
          %p268 = pneg %p90
        $region22: #{light_bag.2} parent=15 // pred_check_branch
          %270 = sbr.rel (%p268) target = $region24
        $region23: #{light_bag.2} parent=15 // pred_region
          %s271 = sand.u32 %s28, 1
          %s272 = scalar_lea.sflag [#allocation6], %s271
          %s273 = sand.u32 %s80, 1
          %s274 = smul.addr %s273, 8
          %s275 = scalar_lea.vmem [#allocation5], %s274
          %s276 = smul.u32 2, %s36
          %s278 = ssub.s32 128, 128
          %279 = vsyncadd %s272, %s278
          %s280 = smul.addr %s35, 2
          %s281 = sadd.s32 %s276, %s280
          %s282 = smul.addr %s281, 64
          %s283 = scalar_lea.hbm %s1, %s282
          %s285 = sshll.u32 %s275, 4
          %s286 = int_to_ptr.vmem [resolvable:$true] %s285
          %288 = dma.hbm_to_vmem [thread:$0]  %s283, 128, %s286, %s272
        $region24: #{light_bag.2} parent=15 // pred_fallthru
          _
        // Predicated region
        $region25: #{light_bag.2} parent=15 // pred_check
          %p289 = pneg %p118
        $region26: #{light_bag.2} parent=15 // pred_check_branch
          %291 = sbr.rel (%p289) target = $region28
        $region27: #{light_bag.2} parent=15 // pred_region
          %s292 = sand.u32 %s28, 1
          %s293 = scalar_lea.sflag [#allocation6], %s292
          %s294 = sand.u32 %s108, 1
          %s295 = smul.addr %s294, 8
          %s296 = scalar_lea.vmem [#allocation7], %s295
          %s297 = smul.u32 2, %s36
          %s299 = ssub.s32 128, 128
          %300 = vsyncadd %s293, %s299
          %s301 = smul.addr %s35, 2
          %s302 = sadd.s32 %s297, %s301
          %s303 = smul.addr %s302, 64
          %s304 = scalar_lea.hbm %s2, %s303
          %s306 = sshll.u32 %s296, 4
          %s307 = int_to_ptr.vmem [resolvable:$true] %s306
          %309 = dma.hbm_to_vmem [thread:$0]  %s304, 128, %s307, %s293
        $region28: #{light_bag.2} parent=15 // pred_fallthru
          _
      $region16: #{light_bag.2} parent=5 // pred_fallthru
        _
      %p310 = scmp.le.s32.totalorder 1, %s28
      %p311 = scmp.lt.s32.totalorder %s28, 3
      %p312 = pnand %p310, %p311
      %p313 = pneg %p312
      // Predicated region
      $region29: #{light_bag.2} parent=5 // pred_check
        _
      $region30: #{light_bag.2} parent=5 // pred_check_branch
        %315 = sbr.rel (%p312) target = $region32
      $region31: #{light_bag.2} parent=5 // pred_region
        %s316 = ssub.s32 %s28, 1
        %s317 = sand.u32 %s55, 1
        %s318 = scalar_lea.sflag [#allocation3], %s317
        %s319 = sand.u32 %s55, 1
        %s320 = smul.addr %s319, 8
        %s321 = scalar_lea.vmem [#allocation2], %s320
        // Predicated region
        $region33: #{light_bag.2} parent=31 // pred_check
          %p322 = pneg %p68
        $region34: #{light_bag.2} parent=31 // pred_check_branch
          %324 = sbr.rel (%p322) target = $region36
        $region35: #{light_bag.2} parent=31 // pred_region
          %325 = dma.done %s318, 128
        $region36: #{light_bag.2} parent=31 // pred_fallthru
          _
        %s326 = sand.u32 %s33, 1
        %s327 = scalar_lea.sflag [#allocation6], %s326
        %s328 = sand.u32 %s83, 1
        %s329 = smul.addr %s328, 8
        %s330 = scalar_lea.vmem [#allocation5], %s329
        // Predicated region
        $region37: #{light_bag.2} parent=31 // pred_check
          %p331 = pneg %p96
        $region38: #{light_bag.2} parent=31 // pred_check_branch
          %333 = sbr.rel (%p331) target = $region40
        $region39: #{light_bag.2} parent=31 // pred_region
          %334 = dma.done %s327, 128
        $region40: #{light_bag.2} parent=31 // pred_fallthru
          _
        %s335 = sand.u32 %s33, 1
        %s336 = scalar_lea.sflag [#allocation6], %s335
        %s337 = sand.u32 %s111, 1
        %s338 = smul.addr %s337, 8
        %s339 = scalar_lea.vmem [#allocation7], %s338
        // Predicated region
        $region41: #{light_bag.2} parent=31 // pred_check
          %p340 = pneg %p124
        $region42: #{light_bag.2} parent=31 // pred_check_branch
          %342 = sbr.rel (%p340) target = $region44
        $region43: #{light_bag.2} parent=31 // pred_region
          %343 = dma.done %s336, 128
        $region44: #{light_bag.2} parent=31 // pred_fallthru
          _
        %s344 = sand.u32 %s55, 1
        %s345 = scalar_lea.sflag [#allocation3], %s344
        %s346 = sand.u32 %s55, 1
        %s347 = smul.addr %s346, 8
        %s348 = scalar_lea.vmem [#allocation2], %s347
        %p349 = pneg %p68
        %p350 = pneg %p65
        %s351 = sand.u32 %s33, 1
        %s352 = scalar_lea.sflag [#allocation6], %s351
        %s353 = sand.u32 %s83, 1
        %s354 = smul.addr %s353, 8
        %s355 = scalar_lea.vmem [#allocation5], %s354
        %p356 = pneg %p96
        %p357 = pneg %p93
        %s358 = sand.u32 %s33, 1
        %s359 = scalar_lea.sflag [#allocation6], %s358
        %s360 = sand.u32 %s111, 1
        %s361 = smul.addr %s360, 8
        %s362 = scalar_lea.vmem [#allocation7], %s361
        %p363 = pneg %p124
        %p364 = pneg %p121
        %p365 = pneg %p150
        %p366 = pneg %p147
        %s367 = sand.u32 %s137, 1
        %s368 = scalar_lea.sflag [#allocation4], %s367
        %s369 = sand.u32 %s137, 1
        %s370 = smul.addr %s369, 4
        %s371 = scalar_lea.vmem [#allocation8], %s370
        %p372 = pneg %p176
        %p373 = pneg %p173
        %s374 = sand.u32 %s33, 1
        %s375 = scalar_lea.sflag [#allocation10], %s374
        %s376 = sand.u32 %s163, 1
        %s377 = smul.addr %s376, 4
        %s378 = scalar_lea.vmem [#allocation9], %s377
        %p379 = pneg %p202
        %p380 = pneg %p199
        %s381 = sand.u32 %s33, 1
        %s382 = scalar_lea.sflag [#allocation10], %s381
        %s383 = sand.u32 %s189, 1
        %s384 = smul.addr %s383, 4
        %s385 = scalar_lea.vmem [#allocation11], %s384
        %p386 = pneg %p228
        %p387 = pneg %p225
        %s388 = sand.u32 %s215, 1
        %s389 = scalar_lea.sflag [#allocation13], %s388
        %s390 = sand.u32 %s215, 1
        %s391 = smul.addr %s390, 4
        %s392 = scalar_lea.vmem [#allocation12], %s391
        %s393 = smul.u32 2, %s38
        %s394 = smul.u32 2, %s38
        %s395 = smul.u32 2, %s38
        %v396 = vld [vmem:[%s321] sm:$0xff]
        %v397 = vld [vmem:[%s330] sm:$0xff]
        %v398 = vld [vmem:[%s339] sm:$0xff]
        %v399 = vxor.u32 %v398, 2147483648
        %v400 = vmul.f32 %v399, 1.442695
        %v401 = vpow.pop %v400
        %v402 = vadd.f32 %v401, 1.0
        %v403 = vrcp.pop %v402
        %v404 = vmul.f32 1.0, %v403
        %v405 = vsub.f32 1.0, %v404
        %v406 = vmul.f32 %v405, %v397
        %v407 = vadd.f32 %v406, %v396
        %v408 = vmul.f32 %v404, %v396
        %v409 = vadd.f32 %v397, %v408
        %v411 = vcombine.high %v407, %v407
        %413 = vmatprep.subr.mxu0 %v411
        %414 = vmatpush1.xpose.msra.mxu0 %v407
        %415 = vmatprep.subr.mxu0 0.0
        %416 = vmatpush1.xpose.msra.mxu0 0.0
        %417 = vmatprep.subr.mxu0 0.0
        %418 = vmatpush1.xpose.msra.mxu0 0.0
        %419 = vmatprep.subr.mxu0 0.0
        %420 = vmatpush1.xpose.msra.mxu0 0.0
        %421 = vmatprep.subr.mxu0 0.0
        %422 = vmatpush1.xpose.msra.mxu0 0.0
        %423 = vmatprep.subr.mxu0 0.0
        %424 = vmatpush1.xpose.msra.mxu0 0.0
        %425 = vmatprep.subr.mxu0 0.0
        %426 = vmatpush1.xpose.msra.mxu0 0.0
        %427 = vmatprep.subr.mxu0 0.0
        %428 = vmatpush1.xpose.msra.mxu0 0.0
        %429 = vmatprep.subr.mxu0 0.0
        %430 = vmatpush1.xpose.msra.mxu0 0.0
        %431 = vmatprep.subr.mxu0 0.0
        %432 = vmatpush1.xpose.msra.mxu0 0.0
        %433 = vmatprep.subr.mxu0 0.0
        %434 = vmatpush1.xpose.msra.mxu0 0.0
        %435 = vmatprep.subr.mxu0 0.0
        %436 = vmatpush1.xpose.msra.mxu0 0.0
        %437 = vmatprep.subr.mxu0 0.0
        %438 = vmatpush1.xpose.msra.mxu0 0.0
        %439 = vmatprep.subr.mxu0 0.0
        %440 = vmatpush1.xpose.msra.mxu0 0.0
        %441 = vmatprep.subr.mxu0 0.0
        %442 = vmatpush1.xpose.msra.mxu0 0.0
        %443 = vmatprep.subr.mxu0 0.0
        %444 = vmatpush1.xpose.msra.mxu0 0.0
        %445 = vmatprep.subr.mxu0 0.0
        %446 = vmatpush1.xpose.msra.mxu0 0.0
        %447 = vmatprep.subr.mxu0 0.0
        %448 = vmatpush1.xpose.msra.mxu0 0.0
        %449 = vmatprep.subr.mxu0 0.0
        %450 = vmatpush1.xpose.msra.mxu0 0.0
        %451 = vmatprep.subr.mxu0 0.0
        %452 = vmatpush1.xpose.msra.mxu0 0.0
        %453 = vmatprep.subr.mxu0 0.0
        %454 = vmatpush1.xpose.msra.mxu0 0.0
        %455 = vmatprep.subr.mxu0 0.0
        %456 = vmatpush1.xpose.msra.mxu0 0.0
        %457 = vmatprep.subr.mxu0 0.0
        %458 = vmatpush1.xpose.msra.mxu0 0.0
        %459 = vmatprep.subr.mxu0 0.0
        %460 = vmatpush1.xpose.msra.mxu0 0.0
        %461 = vmatprep.subr.mxu0 0.0
        %462 = vmatpush1.xpose.msra.mxu0 0.0
        %463 = vmatprep.subr.mxu0 0.0
        %464 = vmatpush1.xpose.msra.mxu0 0.0
        %465 = vmatprep.subr.mxu0 0.0
        %466 = vmatpush1.xpose.msra.mxu0 0.0
        %467 = vmatprep.subr.mxu0 0.0
        %468 = vmatpush1.xpose.msra.mxu0 0.0
        %469 = vmatprep.subr.mxu0 0.0
        %470 = vmatpush1.xpose.msra.mxu0 0.0
        %471 = vmatprep.subr.mxu0 0.0
        %472 = vmatpush1.xpose.msra.mxu0 0.0
        %473 = vmatprep.subr.mxu0 0.0
        %474 = vmatpush1.xpose.msra.mxu0 0.0
        %475 = vmatprep.subr.mxu0 0.0
        %476 = vmatpush1.xpose.msra.mxu0 0.0
        %477 = vmatprep.mubr.f32.mxu0 %v411
        %478 = vmatmul.mubr.f32.gmra.mrb[0].mxu0 %v407
        %v479 = vpop.f32.mrb[0].mxu0
        %v480 = vadd.f32 0.0, %v479
        %v481 = vpop.f32.mrb[0].mxu0
        %482 = vdwg.mxu0
        %v484 = vcombine.high %v409, %v409
        %486 = vmatprep.subr.mxu0 %v484
        %487 = vmatpush1.xpose.msra.mxu0 %v409
        %488 = vmatprep.subr.mxu0 0.0
        %489 = vmatpush1.xpose.msra.mxu0 0.0
        %490 = vmatprep.subr.mxu0 0.0
        %491 = vmatpush1.xpose.msra.mxu0 0.0
        %492 = vmatprep.subr.mxu0 0.0
        %493 = vmatpush1.xpose.msra.mxu0 0.0
        %494 = vmatprep.subr.mxu0 0.0
        %495 = vmatpush1.xpose.msra.mxu0 0.0
        %496 = vmatprep.subr.mxu0 0.0
        %497 = vmatpush1.xpose.msra.mxu0 0.0
        %498 = vmatprep.subr.mxu0 0.0
        %499 = vmatpush1.xpose.msra.mxu0 0.0
        %500 = vmatprep.subr.mxu0 0.0
        %501 = vmatpush1.xpose.msra.mxu0 0.0
        %502 = vmatprep.subr.mxu0 0.0
        %503 = vmatpush1.xpose.msra.mxu0 0.0
        %504 = vmatprep.subr.mxu0 0.0
        %505 = vmatpush1.xpose.msra.mxu0 0.0
        %506 = vmatprep.subr.mxu0 0.0
        %507 = vmatpush1.xpose.msra.mxu0 0.0
        %508 = vmatprep.subr.mxu0 0.0
        %509 = vmatpush1.xpose.msra.mxu0 0.0
        %510 = vmatprep.subr.mxu0 0.0
        %511 = vmatpush1.xpose.msra.mxu0 0.0
        %512 = vmatprep.subr.mxu0 0.0
        %513 = vmatpush1.xpose.msra.mxu0 0.0
        %514 = vmatprep.subr.mxu0 0.0
        %515 = vmatpush1.xpose.msra.mxu0 0.0
        %516 = vmatprep.subr.mxu0 0.0
        %517 = vmatpush1.xpose.msra.mxu0 0.0
        %518 = vmatprep.subr.mxu0 0.0
        %519 = vmatpush1.xpose.msra.mxu0 0.0
        %520 = vmatprep.subr.mxu0 0.0
        %521 = vmatpush1.xpose.msra.mxu0 0.0
        %522 = vmatprep.subr.mxu0 0.0
        %523 = vmatpush1.xpose.msra.mxu0 0.0
        %524 = vmatprep.subr.mxu0 0.0
        %525 = vmatpush1.xpose.msra.mxu0 0.0
        %526 = vmatprep.subr.mxu0 0.0
        %527 = vmatpush1.xpose.msra.mxu0 0.0
        %528 = vmatprep.subr.mxu0 0.0
        %529 = vmatpush1.xpose.msra.mxu0 0.0
        %530 = vmatprep.subr.mxu0 0.0
        %531 = vmatpush1.xpose.msra.mxu0 0.0
        %532 = vmatprep.subr.mxu0 0.0
        %533 = vmatpush1.xpose.msra.mxu0 0.0
        %534 = vmatprep.subr.mxu0 0.0
        %535 = vmatpush1.xpose.msra.mxu0 0.0
        %536 = vmatprep.subr.mxu0 0.0
        %537 = vmatpush1.xpose.msra.mxu0 0.0
        %538 = vmatprep.subr.mxu0 0.0
        %539 = vmatpush1.xpose.msra.mxu0 0.0
        %540 = vmatprep.subr.mxu0 0.0
        %541 = vmatpush1.xpose.msra.mxu0 0.0
        %542 = vmatprep.subr.mxu0 0.0
        %543 = vmatpush1.xpose.msra.mxu0 0.0
        %544 = vmatprep.subr.mxu0 0.0
        %545 = vmatpush1.xpose.msra.mxu0 0.0
        %546 = vmatprep.subr.mxu0 0.0
        %547 = vmatpush1.xpose.msra.mxu0 0.0
        %548 = vmatprep.subr.mxu0 0.0
        %549 = vmatpush1.xpose.msra.mxu0 0.0
        %550 = vmatprep.mubr.f32.mxu0 %v484
        %551 = vmatmul.mubr.f32.gmra.mrb[0].mxu0 %v409
        %v552 = vpop.f32.mrb[0].mxu0
        %v553 = vadd.f32 0.0, %v552
        %v554 = vpop.f32.mrb[0].mxu0
        %555 = vdwg.mxu0
        %vm556 = vcmask 1043456
        %v557 = vsel %vm556, %v407, 0.0
        %v558 = vsel %vm556, %v411, 0.0
        %v559 = vadd.f32 %v557, %v558
        %560 = vadd.xlane.f32.xlu0 %v559
        %v561 = vpop.xlane.xlu0 %560
        %v562 = vsel %vm556, %v409, 0.0
        %v563 = vsel %vm556, %v484, 0.0
        %v564 = vadd.f32 %v562, %v563
        %565 = vadd.xlane.f32.xlu0 %v564
        %v566 = vpop.xlane.xlu0 %565
        %p567 = scmp.eq.s32.totalorder %s38, 0
        // Predicated region
        $region45: #{light_bag.2} parent=31 // pred_check
          %p568 = pneg %p567
        $region46: #{light_bag.2} parent=31 // pred_check_branch
          %570 = sbr.rel (%p568) target = $region48
        $region47: #{light_bag.2} parent=31 // pred_region
          %vm571 = vcmask 27648
          %572 = vst.msk [vmem:[%s371] sm:$0xf] %vm571, 0.0
          %573 = vst.msk [vmem:[%s378] sm:$0xf] %vm571, 0.0
          %vm574 = vcmask 3072
          %575 = vst.msk [vmem:[%s385] sm:$0xf] %vm574, 0.0
          %576 = vst.msk [vmem:[%s392] sm:$0xf] %vm574, 0.0
        $region48: #{light_bag.2} parent=31 // pred_fallthru
          _
        %v577 = vld [vmem:[%s371] sm:$0xf]
        %v578 = vadd.f32 %v577, %v480
        %vm579 = vcmask 27648
        %580 = vst.msk [vmem:[%s371] sm:$0xf] %vm579, %v578
        %v581 = vld [vmem:[%s378] sm:$0xf]
        %v582 = vadd.f32 %v581, %v553
        %583 = vst.msk [vmem:[%s378] sm:$0xf] %vm579, %v582
        %v584 = vld [vmem:[%s385] sm:$0xf]
        %v585 = vadd.f32 %v584, %v561
        %vm586 = vcmask 3072
        %587 = vst.msk [vmem:[%s385] sm:$0xf] %vm586, %v585
        %v588 = vld [vmem:[%s392] sm:$0xf]
        %v589 = vadd.f32 %v588, %v566
        %590 = vst.msk [vmem:[%s392] sm:$0xf] %vm586, %v589
        %s591 = sand.u32 %s137, 1
        %s592 = scalar_lea.sflag [#allocation4], %s591
        %s593 = sand.u32 %s137, 1
        %s594 = smul.addr %s593, 4
        %s595 = scalar_lea.vmem [#allocation8], %s594
        %s596 = sand.u32 %s33, 1
        %s597 = scalar_lea.sflag [#allocation10], %s596
        %s598 = sand.u32 %s163, 1
        %s599 = smul.addr %s598, 4
        %s600 = scalar_lea.vmem [#allocation9], %s599
        %s601 = sand.u32 %s33, 1
        %s602 = scalar_lea.sflag [#allocation10], %s601
        %s603 = sand.u32 %s189, 1
        %s604 = smul.addr %s603, 4
        %s605 = scalar_lea.vmem [#allocation11], %s604
        %s606 = sand.u32 %s215, 1
        %s607 = scalar_lea.sflag [#allocation13], %s606
        %s608 = sand.u32 %s215, 1
        %s609 = smul.addr %s608, 4
        %s610 = scalar_lea.vmem [#allocation12], %s609
        // Predicated region
        $region49: #{light_bag.2} parent=31 // pred_check
          %p611 = pneg %p147
        $region50: #{light_bag.2} parent=31 // pred_check_branch
          %613 = sbr.rel (%p611) target = $region52
        $region51: #{light_bag.2} parent=31 // pred_region
          %s615 = ssub.s32 64, 64
          %616 = vsyncadd %s592, %s615
          %s617 = smul.addr %s37, 64
          %s618 = scalar_lea.hbm %s3, %s617
          %s620 = sshll.u32 %s595, 4
          %s621 = int_to_ptr.vmem [resolvable:$true] %s620
          %623 = dma.vmem_to_hbm [thread:$0]  %s621, 64, %s618, %s592
        $region52: #{light_bag.2} parent=31 // pred_fallthru
          _
        // Predicated region
        $region53: #{light_bag.2} parent=31 // pred_check
          %p624 = pneg %p173
        $region54: #{light_bag.2} parent=31 // pred_check_branch
          %626 = sbr.rel (%p624) target = $region56
        $region55: #{light_bag.2} parent=31 // pred_region
          %s628 = ssub.s32 64, 64
          %629 = vsyncadd %s597, %s628
          %s630 = smul.addr %s37, 64
          %s631 = scalar_lea.hbm %s4, %s630
          %s633 = sshll.u32 %s600, 4
          %s634 = int_to_ptr.vmem [resolvable:$true] %s633
          %636 = dma.vmem_to_hbm [thread:$0]  %s634, 64, %s631, %s597
        $region56: #{light_bag.2} parent=31 // pred_fallthru
          _
        // Predicated region
        $region57: #{light_bag.2} parent=31 // pred_check
          %p637 = pneg %p199
        $region58: #{light_bag.2} parent=31 // pred_check_branch
          %639 = sbr.rel (%p637) target = $region60
        $region59: #{light_bag.2} parent=31 // pred_region
          %s641 = ssub.s32 64, 64
          %642 = vsyncadd %s602, %s641
          %s643 = smul.addr %s37, 64
          %s644 = scalar_lea.hbm %s5, %s643
          %s646 = sshll.u32 %s605, 4
          %s647 = int_to_ptr.vmem [resolvable:$true] %s646
          %649 = dma.vmem_to_hbm [thread:$0]  %s647, 64, %s644, %s602
        $region60: #{light_bag.2} parent=31 // pred_fallthru
          _
        // Predicated region
        $region61: #{light_bag.2} parent=31 // pred_check
          %p650 = pneg %p225
        $region62: #{light_bag.2} parent=31 // pred_check_branch
          %652 = sbr.rel (%p650) target = $region64
        $region63: #{light_bag.2} parent=31 // pred_region
          %s654 = ssub.s32 64, 64
          %655 = vsyncadd %s607, %s654
          %s656 = smul.addr %s37, 64
          %s657 = scalar_lea.hbm %s6, %s656
          %s659 = sshll.u32 %s610, 4
          %s660 = int_to_ptr.vmem [resolvable:$true] %s659
          %662 = dma.vmem_to_hbm [thread:$0]  %s660, 64, %s657, %s607
        $region64: #{light_bag.2} parent=31 // pred_fallthru
          _
      $region32: #{light_bag.2} parent=5 // pred_fallthru
        _
      %p663 = scmp.le.s32.totalorder 2, %s28
      // Predicated region
      $region65: #{light_bag.2} parent=5 // pred_check
        %p664 = pneg %p663
      $region66: #{light_bag.2} parent=5 // pred_check_branch
        %666 = sbr.rel (%p664) target = $region68
      $region67: #{light_bag.2} parent=5 // pred_region
        %s667 = ssub.s32 %s28, 2
        // Predicated region
        $region69: #{light_bag.2} parent=67 // pred_check
          %p668 = pneg %p153
        $region70: #{light_bag.2} parent=67 // pred_check_branch
          %670 = sbr.rel (%p668) target = $region72
        $region71: #{light_bag.2} parent=67 // pred_region
          %s671 = sand.u32 %s138, 1
          %s672 = scalar_lea.sflag [#allocation4], %s671
          %s673 = sand.u32 %s138, 1
          %s674 = smul.addr %s673, 4
          %s675 = scalar_lea.vmem [#allocation8], %s674
          %676 = dma.done %s672, 64
        $region72: #{light_bag.2} parent=67 // pred_fallthru
          _
        // Predicated region
        $region73: #{light_bag.2} parent=67 // pred_check
          %p677 = pneg %p179
        $region74: #{light_bag.2} parent=67 // pred_check_branch
          %679 = sbr.rel (%p677) target = $region76
        $region75: #{light_bag.2} parent=67 // pred_region
          %s680 = sand.u32 %s34, 1
          %s681 = scalar_lea.sflag [#allocation10], %s680
          %s682 = sand.u32 %s164, 1
          %s683 = smul.addr %s682, 4
          %s684 = scalar_lea.vmem [#allocation9], %s683
          %685 = dma.done %s681, 64
        $region76: #{light_bag.2} parent=67 // pred_fallthru
          _
        // Predicated region
        $region77: #{light_bag.2} parent=67 // pred_check
          %p686 = pneg %p205
        $region78: #{light_bag.2} parent=67 // pred_check_branch
          %688 = sbr.rel (%p686) target = $region80
        $region79: #{light_bag.2} parent=67 // pred_region
          %s689 = sand.u32 %s34, 1
          %s690 = scalar_lea.sflag [#allocation10], %s689
          %s691 = sand.u32 %s190, 1
          %s692 = smul.addr %s691, 4
          %s693 = scalar_lea.vmem [#allocation11], %s692
          %694 = dma.done %s690, 64
        $region80: #{light_bag.2} parent=67 // pred_fallthru
          _
        // Predicated region
        $region81: #{light_bag.2} parent=67 // pred_check
          %p695 = pneg %p231
        $region82: #{light_bag.2} parent=67 // pred_check_branch
          %697 = sbr.rel (%p695) target = $region84
        $region83: #{light_bag.2} parent=67 // pred_region
          %s698 = sand.u32 %s216, 1
          %s699 = scalar_lea.sflag [#allocation13], %s698
          %s700 = sand.u32 %s216, 1
          %s701 = smul.addr %s700, 4
          %s702 = scalar_lea.vmem [#allocation12], %s701
          %703 = dma.done %s699, 64
        $region84: #{light_bag.2} parent=67 // pred_fallthru
          _
      $region68: #{light_bag.2} parent=5 // pred_fallthru
        _
    $region6: #{light_bag.2} parent=1 // loop_footer
      %s32 = sadd.s32 1, %s28
    $region7: #{light_bag.2} parent=1 // loop_footer_branch
      %27 = sbr.rel target = $region3
    $region8: #{light_bag.2} parent=1 // loop_exit
      _
    %704 = vsyncpa [#allocation3], 1
    %s705 = scalar_lea.sflag [#allocation3], 1
    %706 = vsyncpa %s705, 1
    %707 = vsyncpa [#allocation6], 1
    %s708 = scalar_lea.sflag [#allocation6], 1
    %709 = vsyncpa %s708, 1
    %710 = vsyncpa [#allocation4], 1
    %s711 = scalar_lea.sflag [#allocation4], 1
    %712 = vsyncpa %s711, 1
    %713 = vsyncpa [#allocation10], 1
    %s714 = scalar_lea.sflag [#allocation10], 1
    %715 = vsyncpa %s714, 1
    %716 = vsyncpa [#allocation13], 1
    %s717 = scalar_lea.sflag [#allocation13], 1
    %718 = vsyncpa %s717, 1

// kernel: light_bag.3
$region0: #{light_bag.3}
  #allocation0 [shape = 'u32[]', space=smem, size = 0x4, offset = 0x4, fixed_abs, tag = 'smem constant byte address 0x4 - core index']
  #allocation1 [shape = 'u32[144,128]{1,0:T(1,128)}', space=vmem, size = 0x12000, scoped, tag = 'internal scratch']
  #allocation2 [shape = 'f32[8,256]{1,0:T(8,128)}', space=vmem, size = 0x2000, scoped, tag = 'scratch operand']
  %s0 = inlined_call_operand.hbm [shape: f32[2,4,256], index: 0, kind: input, shape index: {}]
  %s1 = inlined_call_operand.hbm [shape: f32[2,4,256], index: 1, kind: input, shape index: {}]
  %s2 = inlined_call_operand.hbm [shape: f32[2,4,256], index: 2, kind: input, shape index: {}]
  %s3 = inlined_call_operand.hbm [shape: f32[8,8], index: 3, kind: input, shape index: {}]
  %s4 = inlined_call_operand.hbm [shape: f32[8,1], index: 4, kind: input, shape index: {}]
  %s5 = inlined_call_operand.hbm [shape: f32[2,8,256], index: 5, kind: output, shape index: {}]
  %s6 = sld [smem:[#allocation0]]
  $region73: #{light_bag.3} parent=0
    _
  %s8 = ssub.s32 1, %s6
  %s9 = scalar_select 0, %s8, %s6
  $region1: #{light_bag.3} parent=0
    #allocation3 [shape = 'u8[8192]{0}', space=vmem, size = 0x2000, scoped, tag = 'input window, operand 0']
    #allocation4 [shape = 's32[2]{0}', space=sflag, size = 0x8, scoped, tag = 'scoped memory for light_bag.3']
    #allocation5 [shape = 's32[2]{0}', space=sflag, size = 0x8, scoped, tag = 'scoped memory for light_bag.3']
    #allocation6 [shape = 'u8[8192]{0}', space=vmem, size = 0x2000, scoped, tag = 'input window, operand 1']
    #allocation7 [shape = 's32[2]{0}', space=sflag, size = 0x8, scoped, tag = 'scoped memory for light_bag.3']
    #allocation8 [shape = 'u8[8192]{0}', space=vmem, size = 0x2000, scoped, tag = 'input window, operand 2']
    #allocation9 [shape = 'u8[4096]{0}', space=vmem, size = 0x1000, scoped, tag = 'input window, operand 3, single buffered']
    #allocation10 [shape = 's32[1]{0}', space=sflag, size = 0x4, scoped, tag = 'scoped memory for light_bag.3']
    #allocation11 [shape = 'u8[4096]{0}', space=vmem, size = 0x1000, scoped, tag = 'input window, operand 4, single buffered']
    #allocation12 [shape = 'u8[16384]{0}', space=vmem, size = 0x4000, scoped, tag = 'output window, operand 0']
    %10 = vsyncpa [#allocation4], 0
    %s11 = scalar_lea.sflag [#allocation4], 1
    %12 = vsyncpa %s11, 0
    %13 = vsyncpa [#allocation7], 0
    %s14 = scalar_lea.sflag [#allocation7], 1
    %15 = vsyncpa %s14, 0
    %16 = vsyncpa [#allocation10], 0
    %17 = vsyncpa [#allocation5], 0
    %s18 = scalar_lea.sflag [#allocation5], 1
    %19 = vsyncpa %s18, 0
    loop: start=0, step=1, limit=4
    $region2: #{light_bag.3} parent=1 // loop_pre_header
      _
    $region3: #{light_bag.3} parent=1 // loop_header
      %s21 = sphi 0, %s25
      %p22 = scmp.ge.s32.totalorder %s21, 4
      %s28 = sphi 0, %s40
      %s29 = sphi 0, %s36
      %s30 = sphi 0, %s28
      %s31 = sphi 0, %s29
      %s32 = sphi 0, %s30
      %s33 = sphi 0, %s31
      %s45 = sphi 0, %s47
      %s48 = sphi 0, %s45
      %s49 = sphi 0, %s48
      %s65 = sphi 0, %s49
      %s73 = sphi 0, %s75
      %s76 = sphi 0, %s73
      %s77 = sphi 0, %s76
      %s93 = sphi 0, %s77
      %s101 = sphi 0, %s103
      %s104 = sphi 0, %s101
      %s105 = sphi 0, %s104
      %s121 = sphi 0, %s105
      %s125 = sphi 0, %s125
      %s127 = sphi 0, %s125
      %s128 = sphi 0, %s127
      %s142 = sphi 0, %s128
      %s146 = sphi 0, %s146
      %s148 = sphi 0, %s146
      %s149 = sphi 0, %s148
      %s163 = sphi 0, %s149
      %s171 = sphi 0, %s173
      %s174 = sphi 0, %s171
      %s175 = sphi 0, %s174
      %s191 = sphi 0, %s175
    $region4: #{light_bag.3} parent=1 // loop_header_branch
      %24 = sbr.rel (%p22) target = $region8
    $region5: #{light_bag.3} parent=1 // loop_body
      %s26 = ssub.s32 %s21, 1
      %s27 = ssub.s32 %s21, 2
      %s34 = sadd.s32 1, %s29
      %p35 = scmp.ge.s32.totalorder %s34, 1
      %s36 = scalar_select %p35, 0, %s34
      %s37 = sadd.s32 1, %s28
      %s38 = scalar_select %p35, %s37, %s28
      %p39 = scmp.ge.s32.totalorder %s38, 2
      %s40 = scalar_select %p39, 0, %s38
      %s41 = ssub.s32 %s28, %s40
      %s42 = ssub.s32 %s29, %s36
      %s43 = sor.u32 %s41, %s42
      %p44 = scmp.eq.s32.totalorder %s43, 0
      %s46 = sadd.s32 %s45, 1
      %s47 = scalar_select %p44, %s45, %s46
      %p50 = pneg %p44
      %p51 = scmp.eq.s32.totalorder %s21, 1
      %p52 = por %p50, %p51
      %p53 = scmp.ne.s32.totalorder %s45, %s48
      %p54 = scmp.eq.s32.totalorder %s21, 0
      %p55 = por %p53, %p54
      %p56 = scmp.ne.s32.totalorder %s45, %s48
      %p57 = scmp.eq.s32.totalorder %s26, 1
      %p58 = por %p56, %p57
      %p59 = scmp.ne.s32.totalorder %s48, %s49
      %p60 = scmp.eq.s32.totalorder %s26, 0
      %p61 = por %p59, %p60
      %p62 = scmp.ne.s32.totalorder %s48, %s49
      %p63 = scmp.eq.s32.totalorder %s27, 1
      %p64 = por %p62, %p63
      %p66 = scmp.ne.s32.totalorder %s49, %s65
      %p67 = scmp.eq.s32.totalorder %s27, 0
      %p68 = por %p66, %p67
      %s69 = ssub.s32 %s28, %s40
      %s70 = ssub.s32 %s29, %s36
      %s71 = sor.u32 %s69, %s70
      %p72 = scmp.eq.s32.totalorder %s71, 0
      %s74 = sadd.s32 %s73, 1
      %s75 = scalar_select %p72, %s73, %s74
      %p78 = pneg %p72
      %p79 = scmp.eq.s32.totalorder %s21, 1
      %p80 = por %p78, %p79
      %p81 = scmp.ne.s32.totalorder %s73, %s76
      %p82 = scmp.eq.s32.totalorder %s21, 0
      %p83 = por %p81, %p82
      %p84 = scmp.ne.s32.totalorder %s73, %s76
      %p85 = scmp.eq.s32.totalorder %s26, 1
      %p86 = por %p84, %p85
      %p87 = scmp.ne.s32.totalorder %s76, %s77
      %p88 = scmp.eq.s32.totalorder %s26, 0
      %p89 = por %p87, %p88
      %p90 = scmp.ne.s32.totalorder %s76, %s77
      %p91 = scmp.eq.s32.totalorder %s27, 1
      %p92 = por %p90, %p91
      %p94 = scmp.ne.s32.totalorder %s77, %s93
      %p95 = scmp.eq.s32.totalorder %s27, 0
      %p96 = por %p94, %p95
      %s97 = ssub.s32 %s28, %s40
      %s98 = ssub.s32 %s29, %s36
      %s99 = sor.u32 %s97, %s98
      %p100 = scmp.eq.s32.totalorder %s99, 0
      %s102 = sadd.s32 %s101, 1
      %s103 = scalar_select %p100, %s101, %s102
      %p106 = pneg %p100
      %p107 = scmp.eq.s32.totalorder %s21, 1
      %p108 = por %p106, %p107
      %p109 = scmp.ne.s32.totalorder %s101, %s104
      %p110 = scmp.eq.s32.totalorder %s21, 0
      %p111 = por %p109, %p110
      %p112 = scmp.ne.s32.totalorder %s101, %s104
      %p113 = scmp.eq.s32.totalorder %s26, 1
      %p114 = por %p112, %p113
      %p115 = scmp.ne.s32.totalorder %s104, %s105
      %p116 = scmp.eq.s32.totalorder %s26, 0
      %p117 = por %p115, %p116
      %p118 = scmp.ne.s32.totalorder %s104, %s105
      %p119 = scmp.eq.s32.totalorder %s27, 1
      %p120 = por %p118, %p119
      %p122 = scmp.ne.s32.totalorder %s105, %s121
      %p123 = scmp.eq.s32.totalorder %s27, 0
      %p124 = por %p122, %p123
      %s126 = sadd.s32 %s125, 1
      %p129 = scmp.eq.s32.totalorder %s21, 1
      %p130 = scmp.ne.s32.totalorder %s125, %s127
      %p131 = scmp.eq.s32.totalorder %s21, 0
      %p132 = por %p130, %p131
      %p133 = scmp.ne.s32.totalorder %s125, %s127
      %p134 = scmp.eq.s32.totalorder %s26, 1
      %p135 = por %p133, %p134
      %p136 = scmp.ne.s32.totalorder %s127, %s128
      %p137 = scmp.eq.s32.totalorder %s26, 0
      %p138 = por %p136, %p137
      %p139 = scmp.ne.s32.totalorder %s127, %s128
      %p140 = scmp.eq.s32.totalorder %s27, 1
      %p141 = por %p139, %p140
      %p143 = scmp.ne.s32.totalorder %s128, %s142
      %p144 = scmp.eq.s32.totalorder %s27, 0
      %p145 = por %p143, %p144
      %s147 = sadd.s32 %s146, 1
      %p150 = scmp.eq.s32.totalorder %s21, 1
      %p151 = scmp.ne.s32.totalorder %s146, %s148
      %p152 = scmp.eq.s32.totalorder %s21, 0
      %p153 = por %p151, %p152
      %p154 = scmp.ne.s32.totalorder %s146, %s148
      %p155 = scmp.eq.s32.totalorder %s26, 1
      %p156 = por %p154, %p155
      %p157 = scmp.ne.s32.totalorder %s148, %s149
      %p158 = scmp.eq.s32.totalorder %s26, 0
      %p159 = por %p157, %p158
      %p160 = scmp.ne.s32.totalorder %s148, %s149
      %p161 = scmp.eq.s32.totalorder %s27, 1
      %p162 = por %p160, %p161
      %p164 = scmp.ne.s32.totalorder %s149, %s163
      %p165 = scmp.eq.s32.totalorder %s27, 0
      %p166 = por %p164, %p165
      %s167 = ssub.s32 %s28, %s40
      %s168 = ssub.s32 %s29, %s36
      %s169 = sor.u32 %s167, %s168
      %p170 = scmp.eq.s32.totalorder %s169, 0
      %s172 = sadd.s32 %s171, 1
      %s173 = scalar_select %p170, %s171, %s172
      %p176 = pneg %p170
      %p177 = scmp.eq.s32.totalorder %s21, 1
      %p178 = por %p176, %p177
      %p179 = scmp.ne.s32.totalorder %s171, %s174
      %p180 = scmp.eq.s32.totalorder %s21, 0
      %p181 = por %p179, %p180
      %p182 = scmp.ne.s32.totalorder %s171, %s174
      %p183 = scmp.eq.s32.totalorder %s26, 1
      %p184 = por %p182, %p183
      %p185 = scmp.ne.s32.totalorder %s174, %s175
      %p186 = scmp.eq.s32.totalorder %s26, 0
      %p187 = por %p185, %p186
      %p188 = scmp.ne.s32.totalorder %s174, %s175
      %p189 = scmp.eq.s32.totalorder %s27, 1
      %p190 = por %p188, %p189
      %p192 = scmp.ne.s32.totalorder %s175, %s191
      %p193 = scmp.eq.s32.totalorder %s27, 0
      %p194 = por %p192, %p193
      %p195 = scmp.le.s32.totalorder 1, %s21
      %p196 = scmp.lt.s32.totalorder %s21, 3
      %p197 = pnand %p195, %p196
      %p198 = pneg %p197
      // Predicated region
      $region9: #{light_bag.3} parent=5 // pred_check
        _
      $region10: #{light_bag.3} parent=5 // pred_check_branch
        %200 = sbr.rel (%p197) target = $region12
      $region11: #{light_bag.3} parent=5 // pred_region
        %s201 = ssub.s32 %s21, 1
        // Predicated region
        $region13: #{light_bag.3} parent=11 // pred_check
          %p202 = pneg %p138
        $region14: #{light_bag.3} parent=11 // pred_check_branch
          %204 = sbr.rel (%p202) target = $region16
        $region15: #{light_bag.3} parent=11 // pred_region
          %s206 = ssub.s32 128, 128
          %207 = vsyncadd [#allocation10], %s206
          %s209 = sshll.u32 [#allocation9], 4
          %s210 = int_to_ptr.vmem [resolvable:$true] %s209
          %212 = dma.hbm_to_vmem [thread:$0]  %s3, 128, %s210, [#allocation10]
        $region16: #{light_bag.3} parent=11 // pred_fallthru
          _
        // Predicated region
        $region17: #{light_bag.3} parent=11 // pred_check
          %p213 = pneg %p159
        $region18: #{light_bag.3} parent=11 // pred_check_branch
          %215 = sbr.rel (%p213) target = $region20
        $region19: #{light_bag.3} parent=11 // pred_region
          %s217 = ssub.s32 128, 128
          %218 = vsyncadd [#allocation10], %s217
          %s220 = sshll.u32 [#allocation11], 4
          %s221 = int_to_ptr.vmem [resolvable:$true] %s220
          %223 = dma.hbm_to_vmem [thread:$0]  %s4, 128, %s221, [#allocation10]
        $region20: #{light_bag.3} parent=11 // pred_fallthru
          _
      $region12: #{light_bag.3} parent=5 // pred_fallthru
        _
      %p224 = scmp.lt.s32.totalorder %s21, 2
      // Predicated region
      $region21: #{light_bag.3} parent=5 // pred_check
        %p225 = pneg %p224
      $region22: #{light_bag.3} parent=5 // pred_check_branch
        %227 = sbr.rel (%p225) target = $region24
      $region23: #{light_bag.3} parent=5 // pred_region
        // Predicated region
        $region25: #{light_bag.3} parent=23 // pred_check
          %p228 = pneg %p55
        $region26: #{light_bag.3} parent=23 // pred_check_branch
          %230 = sbr.rel (%p228) target = $region28
        $region27: #{light_bag.3} parent=23 // pred_region
          %s231 = sand.u32 %s45, 1
          %s232 = scalar_lea.sflag [#allocation4], %s231
          %s233 = sand.u32 %s45, 1
          %s234 = smul.addr %s233, 8
          %s235 = scalar_lea.vmem [#allocation3], %s234
          %s236 = smul.u32 2, %s29
          %s238 = ssub.s32 128, 128
          %239 = vsyncadd %s232, %s238
          %s240 = smul.addr %s28, 2
          %s241 = sadd.s32 %s236, %s240
          %s242 = smul.addr %s241, 64
          %s243 = scalar_lea.hbm %s0, %s242
          %s245 = sshll.u32 %s235, 4
          %s246 = int_to_ptr.vmem [resolvable:$true] %s245
          %248 = dma.hbm_to_vmem [thread:$0]  %s243, 128, %s246, %s232
        $region28: #{light_bag.3} parent=23 // pred_fallthru
          _
        // Predicated region
        $region29: #{light_bag.3} parent=23 // pred_check
          %p249 = pneg %p83
        $region30: #{light_bag.3} parent=23 // pred_check_branch
          %251 = sbr.rel (%p249) target = $region32
        $region31: #{light_bag.3} parent=23 // pred_region
          %s252 = sand.u32 %s21, 1
          %s253 = scalar_lea.sflag [#allocation7], %s252
          %s254 = sand.u32 %s73, 1
          %s255 = smul.addr %s254, 8
          %s256 = scalar_lea.vmem [#allocation6], %s255
          %s257 = smul.u32 2, %s29
          %s259 = ssub.s32 128, 128
          %260 = vsyncadd %s253, %s259
          %s261 = smul.addr %s28, 2
          %s262 = sadd.s32 %s257, %s261
          %s263 = smul.addr %s262, 64
          %s264 = scalar_lea.hbm %s1, %s263
          %s266 = sshll.u32 %s256, 4
          %s267 = int_to_ptr.vmem [resolvable:$true] %s266
          %269 = dma.hbm_to_vmem [thread:$0]  %s264, 128, %s267, %s253
        $region32: #{light_bag.3} parent=23 // pred_fallthru
          _
        // Predicated region
        $region33: #{light_bag.3} parent=23 // pred_check
          %p270 = pneg %p111
        $region34: #{light_bag.3} parent=23 // pred_check_branch
          %272 = sbr.rel (%p270) target = $region36
        $region35: #{light_bag.3} parent=23 // pred_region
          %s273 = sand.u32 %s21, 1
          %s274 = scalar_lea.sflag [#allocation7], %s273
          %s275 = sand.u32 %s101, 1
          %s276 = smul.addr %s275, 8
          %s277 = scalar_lea.vmem [#allocation8], %s276
          %s278 = smul.u32 2, %s29
          %s280 = ssub.s32 128, 128
          %281 = vsyncadd %s274, %s280
          %s282 = smul.addr %s28, 2
          %s283 = sadd.s32 %s278, %s282
          %s284 = smul.addr %s283, 64
          %s285 = scalar_lea.hbm %s2, %s284
          %s287 = sshll.u32 %s277, 4
          %s288 = int_to_ptr.vmem [resolvable:$true] %s287
          %290 = dma.hbm_to_vmem [thread:$0]  %s285, 128, %s288, %s274
        $region36: #{light_bag.3} parent=23 // pred_fallthru
          _
      $region24: #{light_bag.3} parent=5 // pred_fallthru
        _
      %p291 = scmp.le.s32.totalorder 1, %s21
      %p292 = scmp.lt.s32.totalorder %s21, 3
      %p293 = pnand %p291, %p292
      %p294 = pneg %p293
      // Predicated region
      $region37: #{light_bag.3} parent=5 // pred_check
        _
      $region38: #{light_bag.3} parent=5 // pred_check_branch
        %296 = sbr.rel (%p293) target = $region40
      $region39: #{light_bag.3} parent=5 // pred_region
        %s297 = ssub.s32 %s21, 1
        %s298 = sand.u32 %s48, 1
        %s299 = scalar_lea.sflag [#allocation4], %s298
        %s300 = sand.u32 %s48, 1
        %s301 = smul.addr %s300, 8
        %s302 = scalar_lea.vmem [#allocation3], %s301
        // Predicated region
        $region41: #{light_bag.3} parent=39 // pred_check
          %p303 = pneg %p61
        $region42: #{light_bag.3} parent=39 // pred_check_branch
          %305 = sbr.rel (%p303) target = $region44
        $region43: #{light_bag.3} parent=39 // pred_region
          %306 = dma.done %s299, 128
        $region44: #{light_bag.3} parent=39 // pred_fallthru
          _
        %s307 = sand.u32 %s26, 1
        %s308 = scalar_lea.sflag [#allocation7], %s307
        %s309 = sand.u32 %s76, 1
        %s310 = smul.addr %s309, 8
        %s311 = scalar_lea.vmem [#allocation6], %s310
        // Predicated region
        $region45: #{light_bag.3} parent=39 // pred_check
          %p312 = pneg %p89
        $region46: #{light_bag.3} parent=39 // pred_check_branch
          %314 = sbr.rel (%p312) target = $region48
        $region47: #{light_bag.3} parent=39 // pred_region
          %315 = dma.done %s308, 128
        $region48: #{light_bag.3} parent=39 // pred_fallthru
          _
        %s316 = sand.u32 %s26, 1
        %s317 = scalar_lea.sflag [#allocation7], %s316
        %s318 = sand.u32 %s104, 1
        %s319 = smul.addr %s318, 8
        %s320 = scalar_lea.vmem [#allocation8], %s319
        // Predicated region
        $region49: #{light_bag.3} parent=39 // pred_check
          %p321 = pneg %p117
        $region50: #{light_bag.3} parent=39 // pred_check_branch
          %323 = sbr.rel (%p321) target = $region52
        $region51: #{light_bag.3} parent=39 // pred_region
          %324 = dma.done %s317, 128
        $region52: #{light_bag.3} parent=39 // pred_fallthru
          _
        // Predicated region
        $region53: #{light_bag.3} parent=39 // pred_check
          %p325 = pneg %p138
        $region54: #{light_bag.3} parent=39 // pred_check_branch
          %327 = sbr.rel (%p325) target = $region56
        $region55: #{light_bag.3} parent=39 // pred_region
          %328 = dma.done [#allocation10], 128
        $region56: #{light_bag.3} parent=39 // pred_fallthru
          _
        // Predicated region
        $region57: #{light_bag.3} parent=39 // pred_check
          %p329 = pneg %p159
        $region58: #{light_bag.3} parent=39 // pred_check_branch
          %331 = sbr.rel (%p329) target = $region60
        $region59: #{light_bag.3} parent=39 // pred_region
          %332 = dma.done [#allocation10], 128
        $region60: #{light_bag.3} parent=39 // pred_fallthru
          _
        %s333 = sand.u32 %s48, 1
        %s334 = scalar_lea.sflag [#allocation4], %s333
        %s335 = sand.u32 %s48, 1
        %s336 = smul.addr %s335, 8
        %s337 = scalar_lea.vmem [#allocation3], %s336
        %p338 = pneg %p61
        %p339 = pneg %p58
        %s340 = sand.u32 %s26, 1
        %s341 = scalar_lea.sflag [#allocation7], %s340
        %s342 = sand.u32 %s76, 1
        %s343 = smul.addr %s342, 8
        %s344 = scalar_lea.vmem [#allocation6], %s343
        %p345 = pneg %p89
        %p346 = pneg %p86
        %s347 = sand.u32 %s26, 1
        %s348 = scalar_lea.sflag [#allocation7], %s347
        %s349 = sand.u32 %s104, 1
        %s350 = smul.addr %s349, 8
        %s351 = scalar_lea.vmem [#allocation8], %s350
        %p352 = pneg %p117
        %p353 = pneg %p114
        %p354 = pneg %p138
        %p355 = pneg %p135
        %p356 = pneg %p159
        %p357 = pneg %p156
        %p358 = pneg %p187
        %p359 = pneg %p184
        %s360 = sand.u32 %s174, 1
        %s361 = scalar_lea.sflag [#allocation5], %s360
        %s362 = sand.u32 %s174, 1
        %s363 = smul.addr %s362, 16
        %s364 = scalar_lea.vmem [#allocation12], %s363
        %s365 = smul.u32 2, %s31
        %s366 = smul.u32 2, %s31
        %s367 = smul.u32 2, %s31
        %s368 = smul.u32 2, %s31
        %v369 = vld [vmem:[%s302] sm:$0xff]
        %v370 = vld [vmem:[%s311] sm:$0xff]
        %v371 = vld [vmem:[%s320] sm:$0xff]
        %v372 = vxor.u32 %v371, 2147483648
        %v373 = vmul.f32 %v372, 1.442695
        %v374 = vpow.pop %v373
        %v375 = vadd.f32 %v374, 1.0
        %v376 = vrcp.pop %v375
        %v377 = vmul.f32 1.0, %v376
        %v378 = vsub.f32 1.0, %v377
        %v379 = vmul.f32 %v378, %v370
        %v380 = vadd.f32 %v379, %v369
        %v381 = vmul.f32 %v377, %v369
        %v382 = vadd.f32 %v370, %v381
        %v384 = vcombine.high %v380, %v380
        %386 = vst [vmem:[#allocation2] sm:$0xf] %v380
        %387 = vst [vmem:[#allocation2 + $0x8] sm:$0xf] %v384
        %v389 = vcombine.low %v382, %v382
        %391 = vst [vmem:[#allocation2] sm:$0xf0] %v389
        %392 = vst [vmem:[#allocation2 + $0x8] sm:$0xf0] %v382
        %v393 = vld [vmem:[#allocation9] sm:$0xff]
        %v394 = vld [vmem:[#allocation2] sm:$0xff]
        %v395 = vld [vmem:[#allocation2 + $0x8] sm:$0xff]
        %v396 = vld [vmem:[#allocation11] sm:$0xff]
        %398 = vset.pattern.permute.xlu0 0
        %399 = vperm.xlu0 %398, %v396
        %v400 = vpop.permute.xlu0 %399
        %vm402 = vcmask 64512
        %v404 = vsel %vm402, %v393, 0
        %406 = vmatprep.subr.mxu0 %v395
        %407 = vmatpush1.msra.mxu0 %v394
        %408 = vmatprep.subr.mxu0 0.0
        %409 = vmatpush1.msra.mxu0 0.0
        %410 = vmatprep.subr.mxu0 0.0
        %411 = vmatpush1.msra.mxu0 0.0
        %412 = vmatprep.subr.mxu0 0.0
        %413 = vmatpush1.msra.mxu0 0.0
        %414 = vmatprep.subr.mxu0 0.0
        %415 = vmatpush1.msra.mxu0 0.0
        %416 = vmatprep.subr.mxu0 0.0
        %417 = vmatpush1.msra.mxu0 0.0
        %418 = vmatprep.subr.mxu0 0.0
        %419 = vmatpush1.msra.mxu0 0.0
        %420 = vmatprep.subr.mxu0 0.0
        %421 = vmatpush1.msra.mxu0 0.0
        %422 = vmatprep.subr.mxu0 0.0
        %423 = vmatpush1.msra.mxu0 0.0
        %424 = vmatprep.subr.mxu0 0.0
        %425 = vmatpush1.msra.mxu0 0.0
        %426 = vmatprep.subr.mxu0 0.0
        %427 = vmatpush1.msra.mxu0 0.0
        %428 = vmatprep.subr.mxu0 0.0
        %429 = vmatpush1.msra.mxu0 0.0
        %430 = vmatprep.subr.mxu0 0.0
        %431 = vmatpush1.msra.mxu0 0.0
        %432 = vmatprep.subr.mxu0 0.0
        %433 = vmatpush1.msra.mxu0 0.0
        %434 = vmatprep.subr.mxu0 0.0
        %435 = vmatpush1.msra.mxu0 0.0
        %436 = vmatprep.subr.mxu0 0.0
        %437 = vmatpush1.msra.mxu0 0.0
        %438 = vmatprep.subr.mxu0 0.0
        %439 = vmatpush1.msra.mxu0 0.0
        %440 = vmatprep.subr.mxu0 0.0
        %441 = vmatpush1.msra.mxu0 0.0
        %442 = vmatprep.subr.mxu0 0.0
        %443 = vmatpush1.msra.mxu0 0.0
        %444 = vmatprep.subr.mxu0 0.0
        %445 = vmatpush1.msra.mxu0 0.0
        %446 = vmatprep.subr.mxu0 0.0
        %447 = vmatpush1.msra.mxu0 0.0
        %448 = vmatprep.subr.mxu0 0.0
        %449 = vmatpush1.msra.mxu0 0.0
        %450 = vmatprep.subr.mxu0 0.0
        %451 = vmatpush1.msra.mxu0 0.0
        %452 = vmatprep.subr.mxu0 0.0
        %453 = vmatpush1.msra.mxu0 0.0
        %454 = vmatprep.subr.mxu0 0.0
        %455 = vmatpush1.msra.mxu0 0.0
        %456 = vmatprep.subr.mxu0 0.0
        %457 = vmatpush1.msra.mxu0 0.0
        %458 = vmatprep.subr.mxu0 0.0
        %459 = vmatpush1.msra.mxu0 0.0
        %460 = vmatprep.subr.mxu0 0.0
        %461 = vmatpush1.msra.mxu0 0.0
        %462 = vmatprep.subr.mxu0 0.0
        %463 = vmatpush1.msra.mxu0 0.0
        %464 = vmatprep.subr.mxu0 0.0
        %465 = vmatpush1.msra.mxu0 0.0
        %466 = vmatprep.subr.mxu0 0.0
        %467 = vmatpush1.msra.mxu0 0.0
        %468 = vmatprep.subr.mxu0 0.0
        %469 = vmatpush1.msra.mxu0 0.0
        %470 = vmatprep.mubr.f32.mxu0 0.0
        %471 = vmatmul.mubr.f32.gmra.mrb[0].mxu0 %v404
        %v472 = vpop.f32.mrb[0].mxu0
        %v473 = vadd.f32 %v400, %v472
        %v474 = vpop.f32.mrb[0].mxu0
        %v475 = vadd.f32 %v400, %v474
        %476 = vdwg.mxu0
        %477 = vst [vmem:[%s364] sm:$0xff] %v473
        %478 = vst [vmem:[%s364 + $0x8] sm:$0xff] %v475
        %s479 = sand.u32 %s174, 1
        %s480 = scalar_lea.sflag [#allocation5], %s479
        %s481 = sand.u32 %s174, 1
        %s482 = smul.addr %s481, 16
        %s483 = scalar_lea.vmem [#allocation12], %s482
        // Predicated region
        $region61: #{light_bag.3} parent=39 // pred_check
          %p484 = pneg %p184
        $region62: #{light_bag.3} parent=39 // pred_check_branch
          %486 = sbr.rel (%p484) target = $region64
        $region63: #{light_bag.3} parent=39 // pred_region
          %s487 = smul.u32 2, %s31
          %s489 = ssub.s32 256, 256
          %490 = vsyncadd %s480, %s489
          %s491 = smul.addr %s30, 2
          %s492 = sadd.s32 %s487, %s491
          %s493 = smul.addr %s492, 128
          %s494 = scalar_lea.hbm %s5, %s493
          %s496 = sshll.u32 %s483, 4
          %s497 = int_to_ptr.vmem [resolvable:$true] %s496
          %499 = dma.vmem_to_hbm [thread:$0]  %s497, 256, %s494, %s480
        $region64: #{light_bag.3} parent=39 // pred_fallthru
          _
      $region40: #{light_bag.3} parent=5 // pred_fallthru
        _
      %p500 = scmp.le.s32.totalorder 2, %s21
      // Predicated region
      $region65: #{light_bag.3} parent=5 // pred_check
        %p501 = pneg %p500
      $region66: #{light_bag.3} parent=5 // pred_check_branch
        %503 = sbr.rel (%p501) target = $region68
      $region67: #{light_bag.3} parent=5 // pred_region
        %s504 = ssub.s32 %s21, 2
        // Predicated region
        $region69: #{light_bag.3} parent=67 // pred_check
          %p505 = pneg %p190
        $region70: #{light_bag.3} parent=67 // pred_check_branch
          %507 = sbr.rel (%p505) target = $region72
        $region71: #{light_bag.3} parent=67 // pred_region
          %s508 = sand.u32 %s175, 1
          %s509 = scalar_lea.sflag [#allocation5], %s508
          %s510 = sand.u32 %s175, 1
          %s511 = smul.addr %s510, 16
          %s512 = scalar_lea.vmem [#allocation12], %s511
          %513 = dma.done %s509, 256
        $region72: #{light_bag.3} parent=67 // pred_fallthru
          _
      $region68: #{light_bag.3} parent=5 // pred_fallthru
        _
    $region6: #{light_bag.3} parent=1 // loop_footer
      %s25 = sadd.s32 1, %s21
    $region7: #{light_bag.3} parent=1 // loop_footer_branch
      %20 = sbr.rel target = $region3
    $region8: #{light_bag.3} parent=1 // loop_exit
      _
    %514 = vsyncpa [#allocation4], 1
    %s515 = scalar_lea.sflag [#allocation4], 1
    %516 = vsyncpa %s515, 1
    %517 = vsyncpa [#allocation7], 1
    %s518 = scalar_lea.sflag [#allocation7], 1
    %519 = vsyncpa %s518, 1
    %520 = vsyncpa [#allocation10], 1
    %521 = vsyncpa [#allocation5], 1
    %s522 = scalar_lea.sflag [#allocation5], 1
    %523 = vsyncpa %s522, 1

</llo_original>
